<compile_context>
chip_gen: v5e
topology: v5e:2x2
jax: 0.10.0
libtpu: 0.0.40
codegen_flags: <defaults>
</compile_context>

<pallas_src>
import functools

import jax
import jax.numpy as jnp
import numpy as np
from jax.experimental import pallas as pl
from jax.experimental.pallas import tpu as pltpu


def _round_up(x, m):
    return (x + m - 1) // m * m


# ----------------------------- Pallas kernel ------------------------------

def _fused_encoder_kernel(patch_ref, wc_ref, bc_ref, pool_ref, gap_ref,
                          wa_ref, ba_ref, pooled_ref, attr_ref):
    """Fused: conv-as-matmul + ReLU + adaptive avg pool + attribute head."""
    # Patchify conv on the MXU (bf16 operands, f32 accumulation).
    feat = jnp.dot(patch_ref[...], wc_ref[...],
                   preferred_element_type=jnp.float32)       # (MT, Cp) f32
    feat = jnp.maximum(feat + bc_ref[...], 0.0)              # bias + ReLU (f32 VPU)

    # Adaptive average pool as a block-diagonal matmul (lane-dense, MXU, f32).
    pooled = jnp.dot(pool_ref[...], feat,
                     preferred_element_type=jnp.float32)     # (BT*E*E, Cp)
    bt, ee, cp = pooled_ref.shape
    pooled_ref[...] = pooled.reshape(bt, ee, cp)

    # Attribute head: per-image global average pool (matmul) -> linear -> sigmoid.
    gap = jnp.dot(gap_ref[...], feat,
                  preferred_element_type=jnp.float32)        # (BT, Cp) f32
    logits = jnp.dot(gap.astype(jnp.bfloat16), wa_ref[...],
                     preferred_element_type=jnp.float32) + ba_ref[...]
    attr_ref[...] = jax.nn.sigmoid(logits)


# ------------------------------ JAX wrapper --------------------------------

def future_and_attr_encoder(images, params, *, patch=4, enc_image_size=4,
                            batch_tile=8):
    """Forward pass.  Returns (pooled features NHWC [B,E,E,C], attrs [B,A])."""
    w_conv, b_conv, w_attr, b_attr = params
    B, Cin, H, W = images.shape
    k = patch
    Hp, Wp = H // k, W // k
    E = enc_image_size
    # TODO(synk): only the divisible AdaptiveAvgPool2d case (Hp % E == 0,
    # Wp % E == 0) is implemented; PyTorch also supports overlapping bins.
    assert Hp % E == 0 and Wp % E == 0
    rh, rw = Hp // E, Wp // E

    K = Cin * k * k
    C = w_conv.shape[1]
    A = w_attr.shape[1]
    LANE = 128
    Kp, Cp, Ap = _round_up(K, LANE), _round_up(C, LANE), _round_up(A, LANE)

    BT = min(batch_tile, B)
    assert B % BT == 0
    n_tiles = B // BT
    MT = BT * Hp * Wp                       # patch rows per grid step

    # im2col (fused under jit with the bf16 cast + lane padding): rows ordered
    # (b, hp, wp), columns (cin, ky, kx) -- matches Conv2d(Cin, C, k, stride=k).
    patches = images.reshape(B, Cin, Hp, k, Wp, k).transpose(0, 2, 4, 1, 3, 5)
    patches = patches.reshape(B * Hp * Wp, K).astype(jnp.bfloat16)
    patches = jnp.pad(patches, ((0, 0), (0, Kp - K)))

    # Zero-padded, lane-dense weights.  Padded feature channels are exactly 0
    # (zero weight columns + zero bias), so they do not perturb the attr head.
    wc = jnp.pad(w_conv, ((0, Kp - K), (0, Cp - C))).astype(jnp.bfloat16)
    bc = jnp.pad(b_conv, ((0, 0), (0, Cp - C))).astype(jnp.float32)
    wa = jnp.pad(w_attr, ((0, Cp - C), (0, Ap - A))).astype(jnp.bfloat16)
    ba = jnp.pad(b_attr, ((0, 0), (0, Ap - A))).astype(jnp.float32)

    # Constant pooling matrices (built host-side, block-diagonal over the BT
    # images in one grid step).
    P = np.zeros((E * E, Hp * Wp), np.float32)
    for e in range(E):
        for f in range(E):
            for hp in range(e * rh, (e + 1) * rh):
                for wp in range(f * rw, (f + 1) * rw):
                    P[e * E + f, hp * Wp + wp] = 1.0 / (rh * rw)
    pool_bd = jnp.asarray(np.kron(np.eye(BT, dtype=np.float32), P))
    gap_bd = jnp.asarray(np.kron(np.eye(BT, dtype=np.float32),
                                 np.full((1, Hp * Wp), 1.0 / (Hp * Wp),
                                         np.float32)))

    pooled_flat, attrs_pad = pl.pallas_call(
        _fused_encoder_kernel,
        out_shape=(jax.ShapeDtypeStruct((B, E * E, Cp), jnp.float32),
                   jax.ShapeDtypeStruct((B, Ap), jnp.float32)),
        grid=(n_tiles,),
        in_specs=[
            pl.BlockSpec((MT, Kp), lambda i: (i, 0)),           # patches: streamed
            pl.BlockSpec((Kp, Cp), lambda i: (0, 0)),           # conv weight: resident
            pl.BlockSpec((1, Cp), lambda i: (0, 0)),            # conv bias
            pl.BlockSpec((BT * E * E, MT), lambda i: (0, 0)),   # pooling matrix
            pl.BlockSpec((BT, MT), lambda i: (0, 0)),           # GAP matrix
            pl.BlockSpec((Cp, Ap), lambda i: (0, 0)),           # attr weight
            pl.BlockSpec((1, Ap), lambda i: (0, 0)),            # attr bias
        ],
        out_specs=(
            pl.BlockSpec((BT, E * E, Cp), lambda i: (i, 0, 0)),
            pl.BlockSpec((BT, Ap), lambda i: (i, 0)),
        ),
        compiler_params=pltpu.CompilerParams(
            dimension_semantics=("parallel",),
            vmem_limit_bytes=32 * 1024 * 1024),
    )(patches, wc, bc, pool_bd, gap_bd, wa, ba)

    pooled = pooled_flat[:, :, :C].reshape(B, E, E, C)
    attrs = attrs_pad[:, :A]
    return pooled, attrs


# Pure-JAX f32 reference for correctness checking.
def _reference(images, params, *, patch=4, enc_image_size=4):
    w_conv, b_conv, w_attr, b_attr = params
    B, Cin, H, W = images.shape
    k = patch
    Hp, Wp = H // k, W // k
    C = w_conv.shape[1]
    E = enc_image_size
    patches = images.reshape(B, Cin, Hp, k, Wp, k).transpose(0, 2, 4, 1, 3, 5)
    patches = patches.reshape(B * Hp * Wp, Cin * k * k).astype(jnp.float32)
    feat = jnp.maximum(patches @ w_conv + b_conv, 0.0)
    features = feat.reshape(B, Hp, Wp, C)
    pooled = features.reshape(B, E, Hp // E, E, Wp // E, C).mean(axis=(2, 4))
    g = feat.reshape(B, Hp * Wp, C).mean(axis=1)
    attrs = jax.nn.sigmoid(g @ w_attr + b_attr)
    return pooled, attrs


if __name__ == "__main__":
    key = jax.random.PRNGKey(0)
    k_img, k_wc, k_bc, k_wa, k_ba = jax.random.split(key, 5)

    # Small shapes: batch=16 (two grid steps of 8 images), 3x32x32 images,
    # patch=4 -> 8x8 feature map, encoder_dim=32, pool to 4x4, 16 attributes.
    B, Cin, H, W = 16, 3, 32, 32
    patch, C_enc, A, E = 4, 32, 16, 4

    images = jax.random.normal(k_img, (B, Cin, H, W), jnp.float32)
    params = (
        0.1 * jax.random.normal(k_wc, (Cin * patch * patch, C_enc), jnp.float32),
        0.1 * jax.random.normal(k_bc, (1, C_enc), jnp.float32),
        0.1 * jax.random.normal(k_wa, (C_enc, A), jnp.float32),
        0.1 * jax.random.normal(k_ba, (1, A), jnp.float32),
    )

    fwd = jax.jit(functools.partial(future_and_attr_encoder,
                                    patch=patch, enc_image_size=E,
                                    batch_tile=8))
    features, attrs = fwd(images, params)
    jax.block_until_ready((features, attrs))

    ref_features, ref_attrs = _reference(images, params,
                                         patch=patch, enc_image_size=E)
    assert features.shape == (B, E, E, C_enc)
    assert attrs.shape == (B, A)
    # bf16 MXU operands with f32 accumulation -> compare against the pure-f32
    # reference with a correspondingly looser tolerance.
    assert jnp.allclose(features, ref_features, atol=2e-2, rtol=2e-2), \
        float(jnp.max(jnp.abs(features - ref_features)))
    assert jnp.allclose(attrs, ref_attrs, atol=1e-2, rtol=1e-2), \
        float(jnp.max(jnp.abs(attrs - ref_attrs)))

    print("KERNEL_OK")
</pallas_src>

<mosaic_0001>
module attributes {stable_mosaic.version = 11 : i64} {
  func.func @_fused_encoder_kernel(%arg0: i32, %arg1: memref<512x128xbf16, #tpu.memory_space<vmem>>, %arg2: memref<128x128xbf16, #tpu.memory_space<vmem>>, %arg3: memref<1x128xf32, #tpu.memory_space<vmem>>, %arg4: memref<128x512xf32, #tpu.memory_space<vmem>>, %arg5: memref<8x512xf32, #tpu.memory_space<vmem>>, %arg6: memref<128x128xbf16, #tpu.memory_space<vmem>>, %arg7: memref<1x128xf32, #tpu.memory_space<vmem>>, %arg8: memref<8x16x128xf32, #tpu.memory_space<vmem>>, %arg9: memref<8x128xf32, #tpu.memory_space<vmem>>) attributes {dimension_semantics = [#tpu.dimension_semantics<parallel>], iteration_bounds = array<i64: 2>, scalar_prefetch = 0 : i64, scratch_operands = 0 : i64, tpu.core_type = #tpu.core_type<tc>, window_params = [{transform_indices = @transform_0, window_bounds = array<i64: 512, 128>}, {pipeline_mode = #tpu.pipeline_mode<synchronous>, transform_indices = @transform_1, window_bounds = array<i64: 128, 128>}, {pipeline_mode = #tpu.pipeline_mode<synchronous>, transform_indices = @transform_2, window_bounds = array<i64: 1, 128>}, {pipeline_mode = #tpu.pipeline_mode<synchronous>, transform_indices = @transform_3, window_bounds = array<i64: 128, 512>}, {pipeline_mode = #tpu.pipeline_mode<synchronous>, transform_indices = @transform_4, window_bounds = array<i64: 8, 512>}, {pipeline_mode = #tpu.pipeline_mode<synchronous>, transform_indices = @transform_5, window_bounds = array<i64: 128, 128>}, {pipeline_mode = #tpu.pipeline_mode<synchronous>, transform_indices = @transform_6, window_bounds = array<i64: 1, 128>}, {transform_indices = @transform_7, window_bounds = array<i64: 8, 16, 128>}, {transform_indices = @transform_8, window_bounds = array<i64: 8, 128>}]} {
    %c0 = arith.constant 0 : index
    %c0_0 = arith.constant 0 : index
    %0 = vector.load %arg1[%c0, %c0_0] : memref<512x128xbf16, #tpu.memory_space<vmem>>, vector<512x128xbf16>
    %c0_1 = arith.constant 0 : index
    %c0_2 = arith.constant 0 : index
    %1 = vector.load %arg2[%c0_1, %c0_2] : memref<128x128xbf16, #tpu.memory_space<vmem>>, vector<128x128xbf16>
    %cst = arith.constant dense<0.000000e+00> : vector<512x128xf32>
    %2 = tpu.matmul %0, %1, %cst {dimension_numbers = #tpu.dot_dimension_numbers<[1], [0], [0], [1], [0, 0, 1, 1], [], []>} : vector<512x128xbf16>, vector<128x128xbf16>, vector<512x128xf32> -> vector<512x128xf32>
    %c0_3 = arith.constant 0 : index
    %c0_4 = arith.constant 0 : index
    %3 = vector.load %arg3[%c0_3, %c0_4] : memref<1x128xf32, #tpu.memory_space<vmem>>, vector<1x128xf32>
    %4 = vector.broadcast %3 : vector<1x128xf32> to vector<512x128xf32>
    %5 = arith.addf %2, %4 : vector<512x128xf32>
    %cst_5 = arith.constant 0.000000e+00 : f32
    %6 = vector.broadcast %cst_5 : f32 to vector<512x128xf32>
    %7 = arith.maximumf %5, %6 : vector<512x128xf32>
    %c0_6 = arith.constant 0 : index
    %c0_7 = arith.constant 0 : index
    %8 = vector.load %arg4[%c0_6, %c0_7] : memref<128x512xf32, #tpu.memory_space<vmem>>, vector<128x512xf32>
    %cst_8 = arith.constant dense<0.000000e+00> : vector<128x128xf32>
    %9 = tpu.matmul %8, %7, %cst_8 {dimension_numbers = #tpu.dot_dimension_numbers<[1], [0], [0], [1], [0, 0, 1, 1], [], []>} : vector<128x512xf32>, vector<512x128xf32>, vector<128x128xf32> -> vector<128x128xf32>
    %10 = vector.shape_cast %9 : vector<128x128xf32> to vector<8x16x128xf32>
    %c0_9 = arith.constant 0 : index
    %c0_10 = arith.constant 0 : index
    %c0_11 = arith.constant 0 : index
    %11 = vector.load %arg8[%c0_9, %c0_10, %c0_11] : memref<8x16x128xf32, #tpu.memory_space<vmem>>, vector<8x16x128xf32>
    tpu.vector_store %arg8[%c0_9, %c0_10, %c0_11], %10 {strides = array<i32>} : memref<8x16x128xf32, #tpu.memory_space<vmem>>, vector<8x16x128xf32>,
    %c0_12 = arith.constant 0 : index
    %c0_13 = arith.constant 0 : index
    %12 = vector.load %arg5[%c0_12, %c0_13] : memref<8x512xf32, #tpu.memory_space<vmem>>, vector<8x512xf32>
    %cst_14 = arith.constant dense<0.000000e+00> : vector<8x128xf32>
    %13 = tpu.matmul %12, %7, %cst_14 {dimension_numbers = #tpu.dot_dimension_numbers<[1], [0], [0], [1], [0, 0, 1, 1], [], []>} : vector<8x512xf32>, vector<512x128xf32>, vector<8x128xf32> -> vector<8x128xf32>
    %14 = arith.truncf %13 : vector<8x128xf32> to vector<8x128xbf16>
    %c0_15 = arith.constant 0 : index
    %c0_16 = arith.constant 0 : index
    %15 = vector.load %arg6[%c0_15, %c0_16] : memref<128x128xbf16, #tpu.memory_space<vmem>>, vector<128x128xbf16>
    %cst_17 = arith.constant dense<0.000000e+00> : vector<8x128xf32>
    %16 = tpu.matmul %14, %15, %cst_17 {dimension_numbers = #tpu.dot_dimension_numbers<[1], [0], [0], [1], [0, 0, 1, 1], [], []>} : vector<8x128xbf16>, vector<128x128xbf16>, vector<8x128xf32> -> vector<8x128xf32>
    %c0_18 = arith.constant 0 : index
    %c0_19 = arith.constant 0 : index
    %17 = vector.load %arg7[%c0_18, %c0_19] : memref<1x128xf32, #tpu.memory_space<vmem>>, vector<1x128xf32>
    %18 = vector.broadcast %17 : vector<1x128xf32> to vector<8x128xf32>
    %19 = arith.addf %16, %18 : vector<8x128xf32>
    %20 = arith.negf %19 : vector<8x128xf32>
    %21 = math.exp %20 : vector<8x128xf32>
    %cst_20 = arith.constant 1.000000e+00 : f32
    %22 = vector.broadcast %cst_20 : f32 to vector<8x128xf32>
    %23 = arith.addf %22, %21 : vector<8x128xf32>
    %24 = arith.divf %22, %23 : vector<8x128xf32>
    %c0_21 = arith.constant 0 : index
    %c0_22 = arith.constant 0 : index
    %25 = vector.load %arg9[%c0_21, %c0_22] : memref<8x128xf32, #tpu.memory_space<vmem>>, vector<8x128xf32>
    tpu.vector_store %arg9[%c0_21, %c0_22], %24 {strides = array<i32>} : memref<8x128xf32, #tpu.memory_space<vmem>>, vector<8x128xf32>,
    return
  }
  func.func @transform_0(%arg0: i32) -> (i32, i32) {
    %c0_i32 = arith.constant 0 : i32
    %c0_i32_0 = arith.constant 0 : i32
    return %arg0, %c0_i32 : i32, i32
  }
  func.func @transform_1(%arg0: i32) -> (i32, i32) {
    %c0_i32 = arith.constant 0 : i32
    %c0_i32_0 = arith.constant 0 : i32
    %c0_i32_1 = arith.constant 0 : i32
    return %c0_i32, %c0_i32_0 : i32, i32
  }
  func.func @transform_2(%arg0: i32) -> (i32, i32) {
    %c0_i32 = arith.constant 0 : i32
    %c0_i32_0 = arith.constant 0 : i32
    %c0_i32_1 = arith.constant 0 : i32
    return %c0_i32, %c0_i32_0 : i32, i32
  }
  func.func @transform_3(%arg0: i32) -> (i32, i32) {
    %c0_i32 = arith.constant 0 : i32
    %c0_i32_0 = arith.constant 0 : i32
    %c0_i32_1 = arith.constant 0 : i32
    return %c0_i32, %c0_i32_0 : i32, i32
  }
  func.func @transform_4(%arg0: i32) -> (i32, i32) {
    %c0_i32 = arith.constant 0 : i32
    %c0_i32_0 = arith.constant 0 : i32
    %c0_i32_1 = arith.constant 0 : i32
    return %c0_i32, %c0_i32_0 : i32, i32
  }
  func.func @transform_5(%arg0: i32) -> (i32, i32) {
    %c0_i32 = arith.constant 0 : i32
    %c0_i32_0 = arith.constant 0 : i32
    %c0_i32_1 = arith.constant 0 : i32
    return %c0_i32, %c0_i32_0 : i32, i32
  }
  func.func @transform_6(%arg0: i32) -> (i32, i32) {
    %c0_i32 = arith.constant 0 : i32
    %c0_i32_0 = arith.constant 0 : i32
    %c0_i32_1 = arith.constant 0 : i32
    return %c0_i32, %c0_i32_0 : i32, i32
  }
  func.func @transform_7(%arg0: i32) -> (i32, i32, i32) {
    %c0_i32 = arith.constant 0 : i32
    %c0_i32_0 = arith.constant 0 : i32
    %c0_i32_1 = arith.constant 0 : i32
    return %arg0, %c0_i32, %c0_i32_0 : i32, i32, i32
  }
  func.func @transform_8(%arg0: i32) -> (i32, i32) {
    %c0_i32 = arith.constant 0 : i32
    %c0_i32_0 = arith.constant 0 : i32
    return %arg0, %c0_i32 : i32, i32
  }
}

</mosaic_0001>

<llo_original>
// kernel: future_and_attr_encoder.1
$region0: #{future_and_attr_encoder.1}
  #allocation0 [shape = 'u32[]', space=smem, size = 0x4, offset = 0x4, fixed_abs, tag = 'smem constant byte address 0x4 - core index']
  #allocation1 [shape = 'u32[72,128]{1,0:T(1,128)}', space=vmem, size = 0x9000, scoped, tag = 'internal scratch']
  %s0 = inlined_call_operand.vmem [shape: bf16[1024,128], index: 0, kind: input, shape index: {}]
  %s1 = inlined_call_operand.vmem [shape: bf16[128,128], index: 1, kind: input, shape index: {}]
  %s2 = inlined_call_operand.vmem [shape: f32[1,128], index: 2, kind: input, shape index: {}]
  %s3 = inlined_call_operand.vmem [shape: f32[128,512], index: 3, kind: input, shape index: {}]
  %s4 = inlined_call_operand.vmem [shape: f32[8,512], index: 4, kind: input, shape index: {}]
  %s5 = inlined_call_operand.vmem [shape: bf16[128,128], index: 5, kind: input, shape index: {}]
  %s6 = inlined_call_operand.vmem [shape: f32[1,128], index: 6, kind: input, shape index: {}]
  %s7 = inlined_call_operand.hbm [shape: f32[16,16,128], index: 7, kind: output, shape index: {0}]
  %s8 = inlined_call_operand.hbm [shape: f32[16,128], index: 8, kind: output, shape index: {1}]
  %9 = xla_tuple %s7, %s8
  %s10 = sld [smem:[#allocation0]]
  $region69: #{future_and_attr_encoder.1} parent=0
    _
  %s12 = ssub.s32 1, %s10
  %s13 = scalar_select 0, %s12, %s10
  $region1: #{future_and_attr_encoder.1} parent=0
    #allocation2 [shape = 'u8[131072]{0}', space=vmem, size = 0x20000, scoped, tag = 'output window, operand 0']
    #allocation3 [shape = 's32[2]{0}', space=sflag, size = 0x8, scoped, tag = 'scoped memory for future_and_attr_encoder.1']
    #allocation4 [shape = 'u8[8192]{0}', space=vmem, size = 0x2000, scoped, tag = 'output window, operand 1']
    #allocation5 [shape = 's32[2]{0}', space=sflag, size = 0x8, scoped, tag = 'scoped memory for future_and_attr_encoder.1']
    %14 = vsyncpa [#allocation3], 0
    %s15 = scalar_lea.sflag [#allocation3], 1
    %16 = vsyncpa %s15, 0
    %17 = vsyncpa [#allocation5], 0
    %s18 = scalar_lea.sflag [#allocation5], 1
    %19 = vsyncpa %s18, 0
    loop: start=0, step=1, limit=4
    $region2: #{future_and_attr_encoder.1} parent=1 // loop_pre_header
      _
    $region3: #{future_and_attr_encoder.1} parent=1 // loop_header
      %s21 = sphi 0, %s25
      %p22 = scmp.ge.s32.totalorder %s21, 4
      %s31 = sphi 0, %s33
      %s34 = sphi 0, %s31
      %s35 = sphi 0, %s34
      %s51 = sphi 0, %s35
      %s55 = sphi 0, %s55
      %s57 = sphi 0, %s55
      %s58 = sphi 0, %s57
      %s72 = sphi 0, %s58
      %s76 = sphi 0, %s76
      %s78 = sphi 0, %s76
      %s79 = sphi 0, %s78
      %s93 = sphi 0, %s79
      %s97 = sphi 0, %s97
      %s99 = sphi 0, %s97
      %s100 = sphi 0, %s99
      %s114 = sphi 0, %s100
      %s118 = sphi 0, %s118
      %s120 = sphi 0, %s118
      %s121 = sphi 0, %s120
      %s135 = sphi 0, %s121
      %s139 = sphi 0, %s139
      %s141 = sphi 0, %s139
      %s142 = sphi 0, %s141
      %s156 = sphi 0, %s142
      %s160 = sphi 0, %s160
      %s162 = sphi 0, %s160
      %s163 = sphi 0, %s162
      %s177 = sphi 0, %s163
      %s183 = sphi 0, %s185
      %s186 = sphi 0, %s183
      %s187 = sphi 0, %s186
      %s203 = sphi 0, %s187
      %s209 = sphi 0, %s211
      %s212 = sphi 0, %s209
      %s213 = sphi 0, %s212
      %s229 = sphi 0, %s213
    $region4: #{future_and_attr_encoder.1} parent=1 // loop_header_branch
      %24 = sbr.rel (%p22) target = $region8
    $region5: #{future_and_attr_encoder.1} parent=1 // loop_body
      %s26 = ssub.s32 %s21, 1
      %s27 = ssub.s32 %s21, 2
      %s28 = sadd.s32 %s21, 1
      %s29 = ssub.s32 %s21, %s28
      %p30 = scmp.eq.s32.totalorder %s29, 0
      %s32 = sadd.s32 %s31, 1
      %s33 = scalar_select %p30, %s31, %s32
      %p36 = pneg %p30
      %p37 = scmp.eq.s32.totalorder %s21, 1
      %p38 = por %p36, %p37
      %p39 = scmp.ne.s32.totalorder %s31, %s34
      %p40 = scmp.eq.s32.totalorder %s21, 0
      %p41 = por %p39, %p40
      %p42 = scmp.ne.s32.totalorder %s31, %s34
      %p43 = scmp.eq.s32.totalorder %s26, 1
      %p44 = por %p42, %p43
      %p45 = scmp.ne.s32.totalorder %s34, %s35
      %p46 = scmp.eq.s32.totalorder %s26, 0
      %p47 = por %p45, %p46
      %p48 = scmp.ne.s32.totalorder %s34, %s35
      %p49 = scmp.eq.s32.totalorder %s27, 1
      %p50 = por %p48, %p49
      %p52 = scmp.ne.s32.totalorder %s35, %s51
      %p53 = scmp.eq.s32.totalorder %s27, 0
      %p54 = por %p52, %p53
      %s56 = sadd.s32 %s55, 1
      %p59 = scmp.eq.s32.totalorder %s21, 1
      %p60 = scmp.ne.s32.totalorder %s55, %s57
      %p61 = scmp.eq.s32.totalorder %s21, 0
      %p62 = por %p60, %p61
      %p63 = scmp.ne.s32.totalorder %s55, %s57
      %p64 = scmp.eq.s32.totalorder %s26, 1
      %p65 = por %p63, %p64
      %p66 = scmp.ne.s32.totalorder %s57, %s58
      %p67 = scmp.eq.s32.totalorder %s26, 0
      %p68 = por %p66, %p67
      %p69 = scmp.ne.s32.totalorder %s57, %s58
      %p70 = scmp.eq.s32.totalorder %s27, 1
      %p71 = por %p69, %p70
      %p73 = scmp.ne.s32.totalorder %s58, %s72
      %p74 = scmp.eq.s32.totalorder %s27, 0
      %p75 = por %p73, %p74
      %s77 = sadd.s32 %s76, 1
      %p80 = scmp.eq.s32.totalorder %s21, 1
      %p81 = scmp.ne.s32.totalorder %s76, %s78
      %p82 = scmp.eq.s32.totalorder %s21, 0
      %p83 = por %p81, %p82
      %p84 = scmp.ne.s32.totalorder %s76, %s78
      %p85 = scmp.eq.s32.totalorder %s26, 1
      %p86 = por %p84, %p85
      %p87 = scmp.ne.s32.totalorder %s78, %s79
      %p88 = scmp.eq.s32.totalorder %s26, 0
      %p89 = por %p87, %p88
      %p90 = scmp.ne.s32.totalorder %s78, %s79
      %p91 = scmp.eq.s32.totalorder %s27, 1
      %p92 = por %p90, %p91
      %p94 = scmp.ne.s32.totalorder %s79, %s93
      %p95 = scmp.eq.s32.totalorder %s27, 0
      %p96 = por %p94, %p95
      %s98 = sadd.s32 %s97, 1
      %p101 = scmp.eq.s32.totalorder %s21, 1
      %p102 = scmp.ne.s32.totalorder %s97, %s99
      %p103 = scmp.eq.s32.totalorder %s21, 0
      %p104 = por %p102, %p103
      %p105 = scmp.ne.s32.totalorder %s97, %s99
      %p106 = scmp.eq.s32.totalorder %s26, 1
      %p107 = por %p105, %p106
      %p108 = scmp.ne.s32.totalorder %s99, %s100
      %p109 = scmp.eq.s32.totalorder %s26, 0
      %p110 = por %p108, %p109
      %p111 = scmp.ne.s32.totalorder %s99, %s100
      %p112 = scmp.eq.s32.totalorder %s27, 1
      %p113 = por %p111, %p112
      %p115 = scmp.ne.s32.totalorder %s100, %s114
      %p116 = scmp.eq.s32.totalorder %s27, 0
      %p117 = por %p115, %p116
      %s119 = sadd.s32 %s118, 1
      %p122 = scmp.eq.s32.totalorder %s21, 1
      %p123 = scmp.ne.s32.totalorder %s118, %s120
      %p124 = scmp.eq.s32.totalorder %s21, 0
      %p125 = por %p123, %p124
      %p126 = scmp.ne.s32.totalorder %s118, %s120
      %p127 = scmp.eq.s32.totalorder %s26, 1
      %p128 = por %p126, %p127
      %p129 = scmp.ne.s32.totalorder %s120, %s121
      %p130 = scmp.eq.s32.totalorder %s26, 0
      %p131 = por %p129, %p130
      %p132 = scmp.ne.s32.totalorder %s120, %s121
      %p133 = scmp.eq.s32.totalorder %s27, 1
      %p134 = por %p132, %p133
      %p136 = scmp.ne.s32.totalorder %s121, %s135
      %p137 = scmp.eq.s32.totalorder %s27, 0
      %p138 = por %p136, %p137
      %s140 = sadd.s32 %s139, 1
      %p143 = scmp.eq.s32.totalorder %s21, 1
      %p144 = scmp.ne.s32.totalorder %s139, %s141
      %p145 = scmp.eq.s32.totalorder %s21, 0
      %p146 = por %p144, %p145
      %p147 = scmp.ne.s32.totalorder %s139, %s141
      %p148 = scmp.eq.s32.totalorder %s26, 1
      %p149 = por %p147, %p148
      %p150 = scmp.ne.s32.totalorder %s141, %s142
      %p151 = scmp.eq.s32.totalorder %s26, 0
      %p152 = por %p150, %p151
      %p153 = scmp.ne.s32.totalorder %s141, %s142
      %p154 = scmp.eq.s32.totalorder %s27, 1
      %p155 = por %p153, %p154
      %p157 = scmp.ne.s32.totalorder %s142, %s156
      %p158 = scmp.eq.s32.totalorder %s27, 0
      %p159 = por %p157, %p158
      %s161 = sadd.s32 %s160, 1
      %p164 = scmp.eq.s32.totalorder %s21, 1
      %p165 = scmp.ne.s32.totalorder %s160, %s162
      %p166 = scmp.eq.s32.totalorder %s21, 0
      %p167 = por %p165, %p166
      %p168 = scmp.ne.s32.totalorder %s160, %s162
      %p169 = scmp.eq.s32.totalorder %s26, 1
      %p170 = por %p168, %p169
      %p171 = scmp.ne.s32.totalorder %s162, %s163
      %p172 = scmp.eq.s32.totalorder %s26, 0
      %p173 = por %p171, %p172
      %p174 = scmp.ne.s32.totalorder %s162, %s163
      %p175 = scmp.eq.s32.totalorder %s27, 1
      %p176 = por %p174, %p175
      %p178 = scmp.ne.s32.totalorder %s163, %s177
      %p179 = scmp.eq.s32.totalorder %s27, 0
      %p180 = por %p178, %p179
      %s181 = ssub.s32 %s21, %s28
      %p182 = scmp.eq.s32.totalorder %s181, 0
      %s184 = sadd.s32 %s183, 1
      %s185 = scalar_select %p182, %s183, %s184
      %p188 = pneg %p182
      %p189 = scmp.eq.s32.totalorder %s21, 1
      %p190 = por %p188, %p189
      %p191 = scmp.ne.s32.totalorder %s183, %s186
      %p192 = scmp.eq.s32.totalorder %s21, 0
      %p193 = por %p191, %p192
      %p194 = scmp.ne.s32.totalorder %s183, %s186
      %p195 = scmp.eq.s32.totalorder %s26, 1
      %p196 = por %p194, %p195
      %p197 = scmp.ne.s32.totalorder %s186, %s187
      %p198 = scmp.eq.s32.totalorder %s26, 0
      %p199 = por %p197, %p198
      %p200 = scmp.ne.s32.totalorder %s186, %s187
      %p201 = scmp.eq.s32.totalorder %s27, 1
      %p202 = por %p200, %p201
      %p204 = scmp.ne.s32.totalorder %s187, %s203
      %p205 = scmp.eq.s32.totalorder %s27, 0
      %p206 = por %p204, %p205
      %s207 = ssub.s32 %s21, %s28
      %p208 = scmp.eq.s32.totalorder %s207, 0
      %s210 = sadd.s32 %s209, 1
      %s211 = scalar_select %p208, %s209, %s210
      %p214 = pneg %p208
      %p215 = scmp.eq.s32.totalorder %s21, 1
      %p216 = por %p214, %p215
      %p217 = scmp.ne.s32.totalorder %s209, %s212
      %p218 = scmp.eq.s32.totalorder %s21, 0
      %p219 = por %p217, %p218
      %p220 = scmp.ne.s32.totalorder %s209, %s212
      %p221 = scmp.eq.s32.totalorder %s26, 1
      %p222 = por %p220, %p221
      %p223 = scmp.ne.s32.totalorder %s212, %s213
      %p224 = scmp.eq.s32.totalorder %s26, 0
      %p225 = por %p223, %p224
      %p226 = scmp.ne.s32.totalorder %s212, %s213
      %p227 = scmp.eq.s32.totalorder %s27, 1
      %p228 = por %p226, %p227
      %p230 = scmp.ne.s32.totalorder %s213, %s229
      %p231 = scmp.eq.s32.totalorder %s27, 0
      %p232 = por %p230, %p231
      %p233 = scmp.le.s32.totalorder 1, %s21
      %p234 = scmp.lt.s32.totalorder %s21, 3
      %p235 = pnand %p233, %p234
      %p236 = pneg %p235
      // Predicated region
      $region9: #{future_and_attr_encoder.1} parent=5 // pred_check
        _
      $region10: #{future_and_attr_encoder.1} parent=5 // pred_check_branch
        %238 = sbr.rel (%p235) target = $region12
      $region11: #{future_and_attr_encoder.1} parent=5 // pred_region
        %s239 = ssub.s32 %s21, 1
        // Predicated region
        $region13: #{future_and_attr_encoder.1} parent=11 // pred_check
          %p240 = pneg %p68
        $region14: #{future_and_attr_encoder.1} parent=11 // pred_check_branch
          %242 = sbr.rel (%p240) target = $region16
        $region15: #{future_and_attr_encoder.1} parent=11 // pred_region
          _
        $region16: #{future_and_attr_encoder.1} parent=11 // pred_fallthru
          _
        // Predicated region
        $region17: #{future_and_attr_encoder.1} parent=11 // pred_check
          %p243 = pneg %p89
        $region18: #{future_and_attr_encoder.1} parent=11 // pred_check_branch
          %245 = sbr.rel (%p243) target = $region20
        $region19: #{future_and_attr_encoder.1} parent=11 // pred_region
          _
        $region20: #{future_and_attr_encoder.1} parent=11 // pred_fallthru
          _
        // Predicated region
        $region21: #{future_and_attr_encoder.1} parent=11 // pred_check
          %p246 = pneg %p110
        $region22: #{future_and_attr_encoder.1} parent=11 // pred_check_branch
          %248 = sbr.rel (%p246) target = $region24
        $region23: #{future_and_attr_encoder.1} parent=11 // pred_region
          _
        $region24: #{future_and_attr_encoder.1} parent=11 // pred_fallthru
          _
        // Predicated region
        $region25: #{future_and_attr_encoder.1} parent=11 // pred_check
          %p249 = pneg %p131
        $region26: #{future_and_attr_encoder.1} parent=11 // pred_check_branch
          %251 = sbr.rel (%p249) target = $region28
        $region27: #{future_and_attr_encoder.1} parent=11 // pred_region
          _
        $region28: #{future_and_attr_encoder.1} parent=11 // pred_fallthru
          _
        // Predicated region
        $region29: #{future_and_attr_encoder.1} parent=11 // pred_check
          %p252 = pneg %p152
        $region30: #{future_and_attr_encoder.1} parent=11 // pred_check_branch
          %254 = sbr.rel (%p252) target = $region32
        $region31: #{future_and_attr_encoder.1} parent=11 // pred_region
          _
        $region32: #{future_and_attr_encoder.1} parent=11 // pred_fallthru
          _
        // Predicated region
        $region33: #{future_and_attr_encoder.1} parent=11 // pred_check
          %p255 = pneg %p173
        $region34: #{future_and_attr_encoder.1} parent=11 // pred_check_branch
          %257 = sbr.rel (%p255) target = $region36
        $region35: #{future_and_attr_encoder.1} parent=11 // pred_region
          _
        $region36: #{future_and_attr_encoder.1} parent=11 // pred_fallthru
          _
      $region12: #{future_and_attr_encoder.1} parent=5 // pred_fallthru
        _
      %p258 = scmp.lt.s32.totalorder %s21, 2
      // Predicated region
      $region37: #{future_and_attr_encoder.1} parent=5 // pred_check
        %p259 = pneg %p258
      $region38: #{future_and_attr_encoder.1} parent=5 // pred_check_branch
        %261 = sbr.rel (%p259) target = $region40
      $region39: #{future_and_attr_encoder.1} parent=5 // pred_region
        // Predicated region
        $region41: #{future_and_attr_encoder.1} parent=39 // pred_check
          %p262 = pneg %p41
        $region42: #{future_and_attr_encoder.1} parent=39 // pred_check_branch
          %264 = sbr.rel (%p262) target = $region44
        $region43: #{future_and_attr_encoder.1} parent=39 // pred_region
          %s265 = smul.u32 64, %s21
          %p266 = scmp.lt.s32.totalorder %s265, 127
          %s267 = scalar_select %p266, %s265, 127
          %s268 = smul.addr %s267, 4
          %s269 = scalar_lea.vmem %s0, %s268
          %s270 = smul.u32 64, %s21
        $region44: #{future_and_attr_encoder.1} parent=39 // pred_fallthru
          _
      $region40: #{future_and_attr_encoder.1} parent=5 // pred_fallthru
        _
      %p271 = scmp.le.s32.totalorder 1, %s21
      %p272 = scmp.lt.s32.totalorder %s21, 3
      %p273 = pnand %p271, %p272
      %p274 = pneg %p273
      // Predicated region
      $region45: #{future_and_attr_encoder.1} parent=5 // pred_check
        _
      $region46: #{future_and_attr_encoder.1} parent=5 // pred_check_branch
        %276 = sbr.rel (%p273) target = $region48
      $region47: #{future_and_attr_encoder.1} parent=5 // pred_region
        %s277 = ssub.s32 %s21, 1
        %s278 = smul.u32 64, %s26
        %p279 = scmp.lt.s32.totalorder %s278, 127
        %s280 = scalar_select %p279, %s278, 127
        %s281 = smul.addr %s280, 4
        %s282 = scalar_lea.vmem %s0, %s281
        %p283 = pneg %p47
        %p284 = pneg %p44
        %p285 = pneg %p68
        %p286 = pneg %p65
        %p287 = pneg %p89
        %p288 = pneg %p86
        %p289 = pneg %p110
        %p290 = pneg %p107
        %p291 = pneg %p131
        %p292 = pneg %p128
        %p293 = pneg %p152
        %p294 = pneg %p149
        %p295 = pneg %p173
        %p296 = pneg %p170
        %p297 = pneg %p199
        %p298 = pneg %p196
        %s299 = sand.u32 %s186, 1
        %s300 = scalar_lea.sflag [#allocation3], %s299
        %s301 = sand.u32 %s186, 1
        %s302 = smul.addr %s301, 128
        %s303 = scalar_lea.vmem [#allocation2], %s302
        %p304 = pneg %p225
        %p305 = pneg %p222
        %s306 = sand.u32 %s212, 1
        %s307 = scalar_lea.sflag [#allocation5], %s306
        %s308 = sand.u32 %s212, 1
        %s309 = smul.addr %s308, 8
        %s310 = scalar_lea.vmem [#allocation4], %s309
        %s311 = smul.u32 64, %s26
        %p312 = scmp.lt.s32.totalorder %s311, 127
        %s313 = scalar_select %p312, %s311, 127
        %s314 = smul.addr %s313, 4
        %s315 = scalar_lea.vmem %s0, %s314
        %s316 = smul.u32 64, %s26
        %s317 = smul.u32 8, %s26
        %v318 = vld [vmem:[%s315] sm:$0xf]
        %v319 = vld [vmem:[%s315 + $0x4] sm:$0xf]
        %v320 = vld [vmem:[%s315 + $0x8] sm:$0xf]
        %v321 = vld [vmem:[%s315 + $0xc] sm:$0xf]
        %v322 = vld [vmem:[%s315 + $0x10] sm:$0xf]
        %v323 = vld [vmem:[%s315 + $0x14] sm:$0xf]
        %v324 = vld [vmem:[%s315 + $0x18] sm:$0xf]
        %v325 = vld [vmem:[%s315 + $0x1c] sm:$0xf]
        %v326 = vld [vmem:[%s315 + $0x20] sm:$0xf]
        %v327 = vld [vmem:[%s315 + $0x24] sm:$0xf]
        %v328 = vld [vmem:[%s315 + $0x28] sm:$0xf]
        %v329 = vld [vmem:[%s315 + $0x2c] sm:$0xf]
        %v330 = vld [vmem:[%s315 + $0x30] sm:$0xf]
        %v331 = vld [vmem:[%s315 + $0x34] sm:$0xf]
        %v332 = vld [vmem:[%s315 + $0x38] sm:$0xf]
        %v333 = vld [vmem:[%s315 + $0x3c] sm:$0xf]
        %v334 = vld [vmem:[%s315 + $0x40] sm:$0xf]
        %v335 = vld [vmem:[%s315 + $0x44] sm:$0xf]
        %v336 = vld [vmem:[%s315 + $0x48] sm:$0xf]
        %v337 = vld [vmem:[%s315 + $0x4c] sm:$0xf]
        %v338 = vld [vmem:[%s315 + $0x50] sm:$0xf]
        %v339 = vld [vmem:[%s315 + $0x54] sm:$0xf]
        %v340 = vld [vmem:[%s315 + $0x58] sm:$0xf]
        %v341 = vld [vmem:[%s315 + $0x5c] sm:$0xf]
        %v342 = vld [vmem:[%s315 + $0x60] sm:$0xf]
        %v343 = vld [vmem:[%s315 + $0x64] sm:$0xf]
        %v344 = vld [vmem:[%s315 + $0x68] sm:$0xf]
        %v345 = vld [vmem:[%s315 + $0x6c] sm:$0xf]
        %v346 = vld [vmem:[%s315 + $0x70] sm:$0xf]
        %v347 = vld [vmem:[%s315 + $0x74] sm:$0xf]
        %v348 = vld [vmem:[%s315 + $0x78] sm:$0xf]
        %v349 = vld [vmem:[%s315 + $0x7c] sm:$0xf]
        %v350 = vld [vmem:[%s315 + $0x80] sm:$0xf]
        %v351 = vld [vmem:[%s315 + $0x84] sm:$0xf]
        %v352 = vld [vmem:[%s315 + $0x88] sm:$0xf]
        %v353 = vld [vmem:[%s315 + $0x8c] sm:$0xf]
        %v354 = vld [vmem:[%s315 + $0x90] sm:$0xf]
        %v355 = vld [vmem:[%s315 + $0x94] sm:$0xf]
        %v356 = vld [vmem:[%s315 + $0x98] sm:$0xf]
        %v357 = vld [vmem:[%s315 + $0x9c] sm:$0xf]
        %v358 = vld [vmem:[%s315 + $0xa0] sm:$0xf]
        %v359 = vld [vmem:[%s315 + $0xa4] sm:$0xf]
        %v360 = vld [vmem:[%s315 + $0xa8] sm:$0xf]
        %v361 = vld [vmem:[%s315 + $0xac] sm:$0xf]
        %v362 = vld [vmem:[%s315 + $0xb0] sm:$0xf]
        %v363 = vld [vmem:[%s315 + $0xb4] sm:$0xf]
        %v364 = vld [vmem:[%s315 + $0xb8] sm:$0xf]
        %v365 = vld [vmem:[%s315 + $0xbc] sm:$0xf]
        %v366 = vld [vmem:[%s315 + $0xc0] sm:$0xf]
        %v367 = vld [vmem:[%s315 + $0xc4] sm:$0xf]
        %v368 = vld [vmem:[%s315 + $0xc8] sm:$0xf]
        %v369 = vld [vmem:[%s315 + $0xcc] sm:$0xf]
        %v370 = vld [vmem:[%s315 + $0xd0] sm:$0xf]
        %v371 = vld [vmem:[%s315 + $0xd4] sm:$0xf]
        %v372 = vld [vmem:[%s315 + $0xd8] sm:$0xf]
        %v373 = vld [vmem:[%s315 + $0xdc] sm:$0xf]
        %v374 = vld [vmem:[%s315 + $0xe0] sm:$0xf]
        %v375 = vld [vmem:[%s315 + $0xe4] sm:$0xf]
        %v376 = vld [vmem:[%s315 + $0xe8] sm:$0xf]
        %v377 = vld [vmem:[%s315 + $0xec] sm:$0xf]
        %v378 = vld [vmem:[%s315 + $0xf0] sm:$0xf]
        %v379 = vld [vmem:[%s315 + $0xf4] sm:$0xf]
        %v380 = vld [vmem:[%s315 + $0xf8] sm:$0xf]
        %v381 = vld [vmem:[%s315 + $0xfc] sm:$0xf]
        %v382 = vld [vmem:[%s1] sm:$0xf]
        %v383 = vld [vmem:[%s1 + $0x4] sm:$0xf]
        %v384 = vld [vmem:[%s1 + $0x8] sm:$0xf]
        %v385 = vld [vmem:[%s1 + $0xc] sm:$0xf]
        %v386 = vld [vmem:[%s1 + $0x10] sm:$0xf]
        %v387 = vld [vmem:[%s1 + $0x14] sm:$0xf]
        %v388 = vld [vmem:[%s1 + $0x18] sm:$0xf]
        %v389 = vld [vmem:[%s1 + $0x1c] sm:$0xf]
        %v390 = vld [vmem:[%s1 + $0x20] sm:$0xf]
        %v391 = vld [vmem:[%s1 + $0x24] sm:$0xf]
        %v392 = vld [vmem:[%s1 + $0x28] sm:$0xf]
        %v393 = vld [vmem:[%s1 + $0x2c] sm:$0xf]
        %v394 = vld [vmem:[%s1 + $0x30] sm:$0xf]
        %v395 = vld [vmem:[%s1 + $0x34] sm:$0xf]
        %v396 = vld [vmem:[%s1 + $0x38] sm:$0xf]
        %v397 = vld [vmem:[%s1 + $0x3c] sm:$0xf]
        %v398 = vld [vmem:[%s2] sm:$0x1]
        %v400 = vperm.slane %v398, 0
        %v466 = vunpack.c.l.b16 %v318
        %v467 = vunpack.c.l.b16 %v319
        %v468 = vunpack.c.l.b16 %v320
        %v469 = vunpack.c.l.b16 %v321
        %v470 = vunpack.c.l.b16 %v322
        %v471 = vunpack.c.l.b16 %v323
        %v472 = vunpack.c.l.b16 %v324
        %v473 = vunpack.c.l.b16 %v325
        %v474 = vunpack.c.l.b16 %v326
        %v475 = vunpack.c.l.b16 %v327
        %v476 = vunpack.c.l.b16 %v328
        %v477 = vunpack.c.l.b16 %v329
        %v478 = vunpack.c.l.b16 %v330
        %v479 = vunpack.c.l.b16 %v331
        %v480 = vunpack.c.l.b16 %v332
        %v481 = vunpack.c.l.b16 %v333
        %v482 = vunpack.c.l.b16 %v334
        %v483 = vunpack.c.l.b16 %v335
        %v484 = vunpack.c.l.b16 %v336
        %v485 = vunpack.c.l.b16 %v337
        %v486 = vunpack.c.l.b16 %v338
        %v487 = vunpack.c.l.b16 %v339
        %v488 = vunpack.c.l.b16 %v340
        %v489 = vunpack.c.l.b16 %v341
        %v490 = vunpack.c.l.b16 %v342
        %v491 = vunpack.c.l.b16 %v343
        %v492 = vunpack.c.l.b16 %v344
        %v493 = vunpack.c.l.b16 %v345
        %v494 = vunpack.c.l.b16 %v346
        %v495 = vunpack.c.l.b16 %v347
        %v496 = vunpack.c.l.b16 %v348
        %v497 = vunpack.c.l.b16 %v349
        %v498 = vunpack.c.l.b16 %v350
        %v499 = vunpack.c.l.b16 %v351
        %v500 = vunpack.c.l.b16 %v352
        %v501 = vunpack.c.l.b16 %v353
        %v502 = vunpack.c.l.b16 %v354
        %v503 = vunpack.c.l.b16 %v355
        %v504 = vunpack.c.l.b16 %v356
        %v505 = vunpack.c.l.b16 %v357
        %v506 = vunpack.c.l.b16 %v358
        %v507 = vunpack.c.l.b16 %v359
        %v508 = vunpack.c.l.b16 %v360
        %v509 = vunpack.c.l.b16 %v361
        %v510 = vunpack.c.l.b16 %v362
        %v511 = vunpack.c.l.b16 %v363
        %v512 = vunpack.c.l.b16 %v364
        %v513 = vunpack.c.l.b16 %v365
        %v514 = vunpack.c.l.b16 %v366
        %v515 = vunpack.c.l.b16 %v367
        %v516 = vunpack.c.l.b16 %v368
        %v517 = vunpack.c.l.b16 %v369
        %v518 = vunpack.c.l.b16 %v370
        %v519 = vunpack.c.l.b16 %v371
        %v520 = vunpack.c.l.b16 %v372
        %v521 = vunpack.c.l.b16 %v373
        %v522 = vunpack.c.l.b16 %v374
        %v523 = vunpack.c.l.b16 %v375
        %v524 = vunpack.c.l.b16 %v376
        %v525 = vunpack.c.l.b16 %v377
        %v526 = vunpack.c.l.b16 %v378
        %v527 = vunpack.c.l.b16 %v379
        %v528 = vunpack.c.l.b16 %v380
        %v529 = vunpack.c.l.b16 %v381
        %v530 = vpack.c.b16 %v467, %v466
        %v531 = vpack.c.b16 %v469, %v468
        %v532 = vpack.c.b16 %v471, %v470
        %v533 = vpack.c.b16 %v473, %v472
        %v534 = vpack.c.b16 %v475, %v474
        %v535 = vpack.c.b16 %v477, %v476
        %v536 = vpack.c.b16 %v479, %v478
        %v537 = vpack.c.b16 %v481, %v480
        %v538 = vpack.c.b16 %v483, %v482
        %v539 = vpack.c.b16 %v485, %v484
        %v540 = vpack.c.b16 %v487, %v486
        %v541 = vpack.c.b16 %v489, %v488
        %v542 = vpack.c.b16 %v491, %v490
        %v543 = vpack.c.b16 %v493, %v492
        %v544 = vpack.c.b16 %v495, %v494
        %v545 = vpack.c.b16 %v497, %v496
        %v546 = vpack.c.b16 %v499, %v498
        %v547 = vpack.c.b16 %v501, %v500
        %v548 = vpack.c.b16 %v503, %v502
        %v549 = vpack.c.b16 %v505, %v504
        %v550 = vpack.c.b16 %v507, %v506
        %v551 = vpack.c.b16 %v509, %v508
        %v552 = vpack.c.b16 %v511, %v510
        %v553 = vpack.c.b16 %v513, %v512
        %v554 = vpack.c.b16 %v515, %v514
        %v555 = vpack.c.b16 %v517, %v516
        %v556 = vpack.c.b16 %v519, %v518
        %v557 = vpack.c.b16 %v521, %v520
        %v558 = vpack.c.b16 %v523, %v522
        %v559 = vpack.c.b16 %v525, %v524
        %v560 = vpack.c.b16 %v527, %v526
        %v561 = vpack.c.b16 %v529, %v528
        %v610 = vunpack.c.l.b16 %v382
        %v611 = vunpack.c.l.b16 %v383
        %v612 = vunpack.c.l.b16 %v384
        %v613 = vunpack.c.l.b16 %v385
        %v614 = vunpack.c.l.b16 %v386
        %v615 = vunpack.c.l.b16 %v387
        %v616 = vunpack.c.l.b16 %v388
        %v617 = vunpack.c.l.b16 %v389
        %v618 = vunpack.c.l.b16 %v390
        %v619 = vunpack.c.l.b16 %v391
        %v620 = vunpack.c.l.b16 %v392
        %v621 = vunpack.c.l.b16 %v393
        %v622 = vunpack.c.l.b16 %v394
        %v623 = vunpack.c.l.b16 %v395
        %v624 = vunpack.c.l.b16 %v396
        %v625 = vunpack.c.l.b16 %v397
        %v626 = vpack.c.b16 %v611, %v610
        %v627 = vpack.c.b16 %v613, %v612
        %v628 = vpack.c.b16 %v615, %v614
        %v629 = vpack.c.b16 %v617, %v616
        %v630 = vpack.c.b16 %v619, %v618
        %v631 = vpack.c.b16 %v621, %v620
        %v632 = vpack.c.b16 %v623, %v622
        %v633 = vpack.c.b16 %v625, %v624
        %642 = vmatpush.bf16.msra.mxu0 %v633
        %643 = vmatpush.bf16.msra.mxu0 %v632
        %644 = vmatpush.bf16.msra.mxu0 %v631
        %645 = vmatpush.bf16.msra.mxu0 %v630
        %646 = vmatpush.bf16.msra.mxu0 %v629
        %647 = vmatpush.bf16.msra.mxu0 %v628
        %648 = vmatpush.bf16.msra.mxu0 %v627
        %649 = vmatpush.bf16.msra.mxu0 %v626
        %650 = vmatmul.bf16.gmra.mxu0 %v530
        %v651 = vpop.f32.mrf.mxu0
        %v652 = vadd.f32 %v400, %v651
        %v653 = vpop.f32.mrf.mxu0
        %v654 = vadd.f32 %v400, %v653
        %655 = vmatmul.bf16.gmra.mxu0 %v531
        %v656 = vpop.f32.mrf.mxu0
        %v657 = vadd.f32 %v400, %v656
        %v658 = vpop.f32.mrf.mxu0
        %v659 = vadd.f32 %v400, %v658
        %660 = vmatmul.bf16.gmra.mxu0 %v532
        %v661 = vpop.f32.mrf.mxu0
        %v662 = vadd.f32 %v400, %v661
        %v663 = vpop.f32.mrf.mxu0
        %v664 = vadd.f32 %v400, %v663
        %665 = vmatmul.bf16.gmra.mxu0 %v533
        %v666 = vpop.f32.mrf.mxu0
        %v667 = vadd.f32 %v400, %v666
        %v668 = vpop.f32.mrf.mxu0
        %v669 = vadd.f32 %v400, %v668
        %670 = vmatmul.bf16.gmra.mxu0 %v534
        %v671 = vpop.f32.mrf.mxu0
        %v672 = vadd.f32 %v400, %v671
        %v673 = vpop.f32.mrf.mxu0
        %v674 = vadd.f32 %v400, %v673
        %675 = vmatmul.bf16.gmra.mxu0 %v535
        %v676 = vpop.f32.mrf.mxu0
        %v677 = vadd.f32 %v400, %v676
        %v678 = vpop.f32.mrf.mxu0
        %v679 = vadd.f32 %v400, %v678
        %680 = vmatmul.bf16.gmra.mxu0 %v536
        %v681 = vpop.f32.mrf.mxu0
        %v682 = vadd.f32 %v400, %v681
        %v683 = vpop.f32.mrf.mxu0
        %v684 = vadd.f32 %v400, %v683
        %685 = vmatmul.bf16.gmra.mxu0 %v537
        %v686 = vpop.f32.mrf.mxu0
        %v687 = vadd.f32 %v400, %v686
        %v688 = vpop.f32.mrf.mxu0
        %v689 = vadd.f32 %v400, %v688
        %690 = vmatmul.bf16.gmra.mxu0 %v538
        %v691 = vpop.f32.mrf.mxu0
        %v692 = vadd.f32 %v400, %v691
        %v693 = vpop.f32.mrf.mxu0
        %v694 = vadd.f32 %v400, %v693
        %695 = vmatmul.bf16.gmra.mxu0 %v539
        %v696 = vpop.f32.mrf.mxu0
        %v697 = vadd.f32 %v400, %v696
        %v698 = vpop.f32.mrf.mxu0
        %v699 = vadd.f32 %v400, %v698
        %700 = vmatmul.bf16.gmra.mxu0 %v540
        %v701 = vpop.f32.mrf.mxu0
        %v702 = vadd.f32 %v400, %v701
        %v703 = vpop.f32.mrf.mxu0
        %v704 = vadd.f32 %v400, %v703
        %705 = vmatmul.bf16.gmra.mxu0 %v541
        %v706 = vpop.f32.mrf.mxu0
        %v707 = vadd.f32 %v400, %v706
        %v708 = vpop.f32.mrf.mxu0
        %v709 = vadd.f32 %v400, %v708
        %710 = vmatmul.bf16.gmra.mxu0 %v542
        %v711 = vpop.f32.mrf.mxu0
        %v712 = vadd.f32 %v400, %v711
        %v713 = vpop.f32.mrf.mxu0
        %v714 = vadd.f32 %v400, %v713
        %715 = vmatmul.bf16.gmra.mxu0 %v543
        %v716 = vpop.f32.mrf.mxu0
        %v717 = vadd.f32 %v400, %v716
        %v718 = vpop.f32.mrf.mxu0
        %v719 = vadd.f32 %v400, %v718
        %720 = vmatmul.bf16.gmra.mxu0 %v544
        %v721 = vpop.f32.mrf.mxu0
        %v722 = vadd.f32 %v400, %v721
        %v723 = vpop.f32.mrf.mxu0
        %v724 = vadd.f32 %v400, %v723
        %725 = vmatmul.bf16.gmra.mxu0 %v545
        %v726 = vpop.f32.mrf.mxu0
        %v727 = vadd.f32 %v400, %v726
        %v728 = vpop.f32.mrf.mxu0
        %v729 = vadd.f32 %v400, %v728
        %730 = vmatmul.bf16.gmra.mxu0 %v546
        %v731 = vpop.f32.mrf.mxu0
        %v732 = vadd.f32 %v400, %v731
        %v733 = vpop.f32.mrf.mxu0
        %v734 = vadd.f32 %v400, %v733
        %735 = vmatmul.bf16.gmra.mxu0 %v547
        %v736 = vpop.f32.mrf.mxu0
        %v737 = vadd.f32 %v400, %v736
        %v738 = vpop.f32.mrf.mxu0
        %v739 = vadd.f32 %v400, %v738
        %740 = vmatmul.bf16.gmra.mxu0 %v548
        %v741 = vpop.f32.mrf.mxu0
        %v742 = vadd.f32 %v400, %v741
        %v743 = vpop.f32.mrf.mxu0
        %v744 = vadd.f32 %v400, %v743
        %745 = vmatmul.bf16.gmra.mxu0 %v549
        %v746 = vpop.f32.mrf.mxu0
        %v747 = vadd.f32 %v400, %v746
        %v748 = vpop.f32.mrf.mxu0
        %v749 = vadd.f32 %v400, %v748
        %750 = vmatmul.bf16.gmra.mxu0 %v550
        %v751 = vpop.f32.mrf.mxu0
        %v752 = vadd.f32 %v400, %v751
        %v753 = vpop.f32.mrf.mxu0
        %v754 = vadd.f32 %v400, %v753
        %755 = vmatmul.bf16.gmra.mxu0 %v551
        %v756 = vpop.f32.mrf.mxu0
        %v757 = vadd.f32 %v400, %v756
        %v758 = vpop.f32.mrf.mxu0
        %v759 = vadd.f32 %v400, %v758
        %760 = vmatmul.bf16.gmra.mxu0 %v552
        %v761 = vpop.f32.mrf.mxu0
        %v762 = vadd.f32 %v400, %v761
        %v763 = vpop.f32.mrf.mxu0
        %v764 = vadd.f32 %v400, %v763
        %765 = vmatmul.bf16.gmra.mxu0 %v553
        %v766 = vpop.f32.mrf.mxu0
        %v767 = vadd.f32 %v400, %v766
        %v768 = vpop.f32.mrf.mxu0
        %v769 = vadd.f32 %v400, %v768
        %770 = vmatmul.bf16.gmra.mxu0 %v554
        %v771 = vpop.f32.mrf.mxu0
        %v772 = vadd.f32 %v400, %v771
        %v773 = vpop.f32.mrf.mxu0
        %v774 = vadd.f32 %v400, %v773
        %775 = vmatmul.bf16.gmra.mxu0 %v555
        %v776 = vpop.f32.mrf.mxu0
        %v777 = vadd.f32 %v400, %v776
        %v778 = vpop.f32.mrf.mxu0
        %v779 = vadd.f32 %v400, %v778
        %780 = vmatmul.bf16.gmra.mxu0 %v556
        %v781 = vpop.f32.mrf.mxu0
        %v782 = vadd.f32 %v400, %v781
        %v783 = vpop.f32.mrf.mxu0
        %v784 = vadd.f32 %v400, %v783
        %785 = vmatmul.bf16.gmra.mxu0 %v557
        %v786 = vpop.f32.mrf.mxu0
        %v787 = vadd.f32 %v400, %v786
        %v788 = vpop.f32.mrf.mxu0
        %v789 = vadd.f32 %v400, %v788
        %790 = vmatmul.bf16.gmra.mxu0 %v558
        %v791 = vpop.f32.mrf.mxu0
        %v792 = vadd.f32 %v400, %v791
        %v793 = vpop.f32.mrf.mxu0
        %v794 = vadd.f32 %v400, %v793
        %795 = vmatmul.bf16.gmra.mxu0 %v559
        %v796 = vpop.f32.mrf.mxu0
        %v797 = vadd.f32 %v400, %v796
        %v798 = vpop.f32.mrf.mxu0
        %v799 = vadd.f32 %v400, %v798
        %800 = vmatmul.bf16.gmra.mxu0 %v560
        %v801 = vpop.f32.mrf.mxu0
        %v802 = vadd.f32 %v400, %v801
        %v803 = vpop.f32.mrf.mxu0
        %v804 = vadd.f32 %v400, %v803
        %805 = vmatmul.bf16.gmra.mxu0 %v561
        %v806 = vpop.f32.mrf.mxu0
        %v807 = vadd.f32 %v400, %v806
        %v808 = vpop.f32.mrf.mxu0
        %v809 = vadd.f32 %v400, %v808
        %810 = vdwg.mxu0
        %v811 = vmax.f32 %v652, 0.0
        %v812 = vmax.f32 %v654, 0.0
        %v813 = vmax.f32 %v657, 0.0
        %v814 = vmax.f32 %v659, 0.0
        %v815 = vmax.f32 %v662, 0.0
        %v816 = vmax.f32 %v664, 0.0
        %v817 = vmax.f32 %v667, 0.0
        %v818 = vmax.f32 %v669, 0.0
        %v819 = vmax.f32 %v672, 0.0
        %v820 = vmax.f32 %v674, 0.0
        %v821 = vmax.f32 %v677, 0.0
        %v822 = vmax.f32 %v679, 0.0
        %v823 = vmax.f32 %v682, 0.0
        %v824 = vmax.f32 %v684, 0.0
        %v825 = vmax.f32 %v687, 0.0
        %v826 = vmax.f32 %v689, 0.0
        %v827 = vmax.f32 %v692, 0.0
        %v828 = vmax.f32 %v694, 0.0
        %v829 = vmax.f32 %v697, 0.0
        %v830 = vmax.f32 %v699, 0.0
        %v831 = vmax.f32 %v702, 0.0
        %v832 = vmax.f32 %v704, 0.0
        %v833 = vmax.f32 %v707, 0.0
        %v834 = vmax.f32 %v709, 0.0
        %v835 = vmax.f32 %v712, 0.0
        %v836 = vmax.f32 %v714, 0.0
        %v837 = vmax.f32 %v717, 0.0
        %v838 = vmax.f32 %v719, 0.0
        %v839 = vmax.f32 %v722, 0.0
        %v840 = vmax.f32 %v724, 0.0
        %v841 = vmax.f32 %v727, 0.0
        %v842 = vmax.f32 %v729, 0.0
        %v843 = vmax.f32 %v732, 0.0
        %v844 = vmax.f32 %v734, 0.0
        %v845 = vmax.f32 %v737, 0.0
        %v846 = vmax.f32 %v739, 0.0
        %v847 = vmax.f32 %v742, 0.0
        %v848 = vmax.f32 %v744, 0.0
        %v849 = vmax.f32 %v747, 0.0
        %v850 = vmax.f32 %v749, 0.0
        %v851 = vmax.f32 %v752, 0.0
        %v852 = vmax.f32 %v754, 0.0
        %v853 = vmax.f32 %v757, 0.0
        %v854 = vmax.f32 %v759, 0.0
        %v855 = vmax.f32 %v762, 0.0
        %v856 = vmax.f32 %v764, 0.0
        %v857 = vmax.f32 %v767, 0.0
        %v858 = vmax.f32 %v769, 0.0
        %v859 = vmax.f32 %v772, 0.0
        %v860 = vmax.f32 %v774, 0.0
        %v861 = vmax.f32 %v777, 0.0
        %v862 = vmax.f32 %v779, 0.0
        %v863 = vmax.f32 %v782, 0.0
        %v864 = vmax.f32 %v784, 0.0
        %v865 = vmax.f32 %v787, 0.0
        %v866 = vmax.f32 %v789, 0.0
        %v867 = vmax.f32 %v792, 0.0
        %v868 = vmax.f32 %v794, 0.0
        %v869 = vmax.f32 %v797, 0.0
        %v870 = vmax.f32 %v799, 0.0
        %v871 = vmax.f32 %v802, 0.0
        %v872 = vmax.f32 %v804, 0.0
        %v873 = vmax.f32 %v807, 0.0
        %v874 = vmax.f32 %v809, 0.0
        %v875 = vld [vmem:[%s3] sm:$0xff]
        %v876 = vld [vmem:[%s3 + $0x8] sm:$0xff]
        %v877 = vld [vmem:[%s3 + $0x10] sm:$0xff]
        %v878 = vld [vmem:[%s3 + $0x18] sm:$0xff]
        %v879 = vld [vmem:[%s3 + $0x20] sm:$0xff]
        %v880 = vld [vmem:[%s3 + $0x28] sm:$0xff]
        %v881 = vld [vmem:[%s3 + $0x30] sm:$0xff]
        %v882 = vld [vmem:[%s3 + $0x38] sm:$0xff]
        %v883 = vld [vmem:[%s3 + $0x40] sm:$0xff]
        %v884 = vld [vmem:[%s3 + $0x48] sm:$0xff]
        %v885 = vld [vmem:[%s3 + $0x50] sm:$0xff]
        %v886 = vld [vmem:[%s3 + $0x58] sm:$0xff]
        %v887 = vld [vmem:[%s3 + $0x60] sm:$0xff]
        %v888 = vld [vmem:[%s3 + $0x68] sm:$0xff]
        %v889 = vld [vmem:[%s3 + $0x70] sm:$0xff]
        %v890 = vld [vmem:[%s3 + $0x78] sm:$0xff]
        %v891 = vld [vmem:[%s3 + $0x80] sm:$0xff]
        %v892 = vld [vmem:[%s3 + $0x88] sm:$0xff]
        %v893 = vld [vmem:[%s3 + $0x90] sm:$0xff]
        %v894 = vld [vmem:[%s3 + $0x98] sm:$0xff]
        %v895 = vld [vmem:[%s3 + $0xa0] sm:$0xff]
        %v896 = vld [vmem:[%s3 + $0xa8] sm:$0xff]
        %v897 = vld [vmem:[%s3 + $0xb0] sm:$0xff]
        %v898 = vld [vmem:[%s3 + $0xb8] sm:$0xff]
        %v899 = vld [vmem:[%s3 + $0xc0] sm:$0xff]
        %v900 = vld [vmem:[%s3 + $0xc8] sm:$0xff]
        %v901 = vld [vmem:[%s3 + $0xd0] sm:$0xff]
        %v902 = vld [vmem:[%s3 + $0xd8] sm:$0xff]
        %v903 = vld [vmem:[%s3 + $0xe0] sm:$0xff]
        %v904 = vld [vmem:[%s3 + $0xe8] sm:$0xff]
        %v905 = vld [vmem:[%s3 + $0xf0] sm:$0xff]
        %v906 = vld [vmem:[%s3 + $0xf8] sm:$0xff]
        %v907 = vld [vmem:[%s3 + $0x100] sm:$0xff]
        %v908 = vld [vmem:[%s3 + $0x108] sm:$0xff]
        %v909 = vld [vmem:[%s3 + $0x110] sm:$0xff]
        %v910 = vld [vmem:[%s3 + $0x118] sm:$0xff]
        %v911 = vld [vmem:[%s3 + $0x120] sm:$0xff]
        %v912 = vld [vmem:[%s3 + $0x128] sm:$0xff]
        %v913 = vld [vmem:[%s3 + $0x130] sm:$0xff]
        %v914 = vld [vmem:[%s3 + $0x138] sm:$0xff]
        %v915 = vld [vmem:[%s3 + $0x140] sm:$0xff]
        %v916 = vld [vmem:[%s3 + $0x148] sm:$0xff]
        %v917 = vld [vmem:[%s3 + $0x150] sm:$0xff]
        %v918 = vld [vmem:[%s3 + $0x158] sm:$0xff]
        %v919 = vld [vmem:[%s3 + $0x160] sm:$0xff]
        %v920 = vld [vmem:[%s3 + $0x168] sm:$0xff]
        %v921 = vld [vmem:[%s3 + $0x170] sm:$0xff]
        %v922 = vld [vmem:[%s3 + $0x178] sm:$0xff]
        %v923 = vld [vmem:[%s3 + $0x180] sm:$0xff]
        %v924 = vld [vmem:[%s3 + $0x188] sm:$0xff]
        %v925 = vld [vmem:[%s3 + $0x190] sm:$0xff]
        %v926 = vld [vmem:[%s3 + $0x198] sm:$0xff]
        %v927 = vld [vmem:[%s3 + $0x1a0] sm:$0xff]
        %v928 = vld [vmem:[%s3 + $0x1a8] sm:$0xff]
        %v929 = vld [vmem:[%s3 + $0x1b0] sm:$0xff]
        %v930 = vld [vmem:[%s3 + $0x1b8] sm:$0xff]
        %v931 = vld [vmem:[%s3 + $0x1c0] sm:$0xff]
        %v932 = vld [vmem:[%s3 + $0x1c8] sm:$0xff]
        %v933 = vld [vmem:[%s3 + $0x1d0] sm:$0xff]
        %v934 = vld [vmem:[%s3 + $0x1d8] sm:$0xff]
        %v935 = vld [vmem:[%s3 + $0x1e0] sm:$0xff]
        %v936 = vld [vmem:[%s3 + $0x1e8] sm:$0xff]
        %v937 = vld [vmem:[%s3 + $0x1f0] sm:$0xff]
        %v938 = vld [vmem:[%s3 + $0x1f8] sm:$0xff]
        %939 = vmatpush.msra.mxu0 %v826
        %940 = vmatpush.msra.mxu0 %v825
        %941 = vmatpush.msra.mxu0 %v824
        %942 = vmatpush.msra.mxu0 %v823
        %943 = vmatpush.msra.mxu0 %v822
        %944 = vmatpush.msra.mxu0 %v821
        %945 = vmatpush.msra.mxu0 %v820
        %946 = vmatpush.msra.mxu0 %v819
        %947 = vmatpush.msra.mxu0 %v818
        %948 = vmatpush.msra.mxu0 %v817
        %949 = vmatpush.msra.mxu0 %v816
        %950 = vmatpush.msra.mxu0 %v815
        %951 = vmatpush.msra.mxu0 %v814
        %952 = vmatpush.msra.mxu0 %v813
        %953 = vmatpush.msra.mxu0 %v812
        %954 = vmatpush.msra.mxu0 %v811
        %955 = vmatmul.f32.gmra.mxu0 %v875
        %v956 = vpop.f32.mrf.mxu0
        %v957 = vadd.f32 0.0, %v956
        %958 = vmatmul.f32.gmra.mxu0 %v879
        %v959 = vpop.f32.mrf.mxu0
        %v960 = vadd.f32 0.0, %v959
        %961 = vmatmul.f32.gmra.mxu0 %v883
        %v962 = vpop.f32.mrf.mxu0
        %v963 = vadd.f32 0.0, %v962
        %964 = vmatmul.f32.gmra.mxu0 %v887
        %v965 = vpop.f32.mrf.mxu0
        %v966 = vadd.f32 0.0, %v965
        %967 = vmatmul.f32.gmra.mxu0 %v891
        %v968 = vpop.f32.mrf.mxu0
        %v969 = vadd.f32 0.0, %v968
        %970 = vmatmul.f32.gmra.mxu0 %v895
        %v971 = vpop.f32.mrf.mxu0
        %v972 = vadd.f32 0.0, %v971
        %973 = vmatmul.f32.gmra.mxu0 %v899
        %v974 = vpop.f32.mrf.mxu0
        %v975 = vadd.f32 0.0, %v974
        %976 = vmatmul.f32.gmra.mxu0 %v903
        %v977 = vpop.f32.mrf.mxu0
        %v978 = vadd.f32 0.0, %v977
        %979 = vmatmul.f32.gmra.mxu0 %v907
        %v980 = vpop.f32.mrf.mxu0
        %v981 = vadd.f32 0.0, %v980
        %982 = vmatmul.f32.gmra.mxu0 %v911
        %v983 = vpop.f32.mrf.mxu0
        %v984 = vadd.f32 0.0, %v983
        %985 = vmatmul.f32.gmra.mxu0 %v915
        %v986 = vpop.f32.mrf.mxu0
        %v987 = vadd.f32 0.0, %v986
        %988 = vmatmul.f32.gmra.mxu0 %v919
        %v989 = vpop.f32.mrf.mxu0
        %v990 = vadd.f32 0.0, %v989
        %991 = vmatmul.f32.gmra.mxu0 %v923
        %v992 = vpop.f32.mrf.mxu0
        %v993 = vadd.f32 0.0, %v992
        %994 = vmatmul.f32.gmra.mxu0 %v927
        %v995 = vpop.f32.mrf.mxu0
        %v996 = vadd.f32 0.0, %v995
        %997 = vmatmul.f32.gmra.mxu0 %v931
        %v998 = vpop.f32.mrf.mxu0
        %v999 = vadd.f32 0.0, %v998
        %1000 = vmatmul.f32.gmra.mxu0 %v935
        %v1001 = vpop.f32.mrf.mxu0
        %v1002 = vadd.f32 0.0, %v1001
        %1003 = vdwg.mxu0
        %1004 = vmatpush.msra.mxu0 %v842
        %1005 = vmatpush.msra.mxu0 %v841
        %1006 = vmatpush.msra.mxu0 %v840
        %1007 = vmatpush.msra.mxu0 %v839
        %1008 = vmatpush.msra.mxu0 %v838
        %1009 = vmatpush.msra.mxu0 %v837
        %1010 = vmatpush.msra.mxu0 %v836
        %1011 = vmatpush.msra.mxu0 %v835
        %1012 = vmatpush.msra.mxu0 %v834
        %1013 = vmatpush.msra.mxu0 %v833
        %1014 = vmatpush.msra.mxu0 %v832
        %1015 = vmatpush.msra.mxu0 %v831
        %1016 = vmatpush.msra.mxu0 %v830
        %1017 = vmatpush.msra.mxu0 %v829
        %1018 = vmatpush.msra.mxu0 %v828
        %1019 = vmatpush.msra.mxu0 %v827
        %1020 = vmatmul.f32.gmra.mxu0 %v876
        %v1021 = vpop.f32.mrf.mxu0
        %v1022 = vadd.f32 %v957, %v1021
        %1023 = vmatmul.f32.gmra.mxu0 %v880
        %v1024 = vpop.f32.mrf.mxu0
        %v1025 = vadd.f32 %v960, %v1024
        %1026 = vmatmul.f32.gmra.mxu0 %v884
        %v1027 = vpop.f32.mrf.mxu0
        %v1028 = vadd.f32 %v963, %v1027
        %1029 = vmatmul.f32.gmra.mxu0 %v888
        %v1030 = vpop.f32.mrf.mxu0
        %v1031 = vadd.f32 %v966, %v1030
        %1032 = vmatmul.f32.gmra.mxu0 %v892
        %v1033 = vpop.f32.mrf.mxu0
        %v1034 = vadd.f32 %v969, %v1033
        %1035 = vmatmul.f32.gmra.mxu0 %v896
        %v1036 = vpop.f32.mrf.mxu0
        %v1037 = vadd.f32 %v972, %v1036
        %1038 = vmatmul.f32.gmra.mxu0 %v900
        %v1039 = vpop.f32.mrf.mxu0
        %v1040 = vadd.f32 %v975, %v1039
        %1041 = vmatmul.f32.gmra.mxu0 %v904
        %v1042 = vpop.f32.mrf.mxu0
        %v1043 = vadd.f32 %v978, %v1042
        %1044 = vmatmul.f32.gmra.mxu0 %v908
        %v1045 = vpop.f32.mrf.mxu0
        %v1046 = vadd.f32 %v981, %v1045
        %1047 = vmatmul.f32.gmra.mxu0 %v912
        %v1048 = vpop.f32.mrf.mxu0
        %v1049 = vadd.f32 %v984, %v1048
        %1050 = vmatmul.f32.gmra.mxu0 %v916
        %v1051 = vpop.f32.mrf.mxu0
        %v1052 = vadd.f32 %v987, %v1051
        %1053 = vmatmul.f32.gmra.mxu0 %v920
        %v1054 = vpop.f32.mrf.mxu0
        %v1055 = vadd.f32 %v990, %v1054
        %1056 = vmatmul.f32.gmra.mxu0 %v924
        %v1057 = vpop.f32.mrf.mxu0
        %v1058 = vadd.f32 %v993, %v1057
        %1059 = vmatmul.f32.gmra.mxu0 %v928
        %v1060 = vpop.f32.mrf.mxu0
        %v1061 = vadd.f32 %v996, %v1060
        %1062 = vmatmul.f32.gmra.mxu0 %v932
        %v1063 = vpop.f32.mrf.mxu0
        %v1064 = vadd.f32 %v999, %v1063
        %1065 = vmatmul.f32.gmra.mxu0 %v936
        %v1066 = vpop.f32.mrf.mxu0
        %v1067 = vadd.f32 %v1002, %v1066
        %1068 = vdwg.mxu0
        %1069 = vmatpush.msra.mxu0 %v858
        %1070 = vmatpush.msra.mxu0 %v857
        %1071 = vmatpush.msra.mxu0 %v856
        %1072 = vmatpush.msra.mxu0 %v855
        %1073 = vmatpush.msra.mxu0 %v854
        %1074 = vmatpush.msra.mxu0 %v853
        %1075 = vmatpush.msra.mxu0 %v852
        %1076 = vmatpush.msra.mxu0 %v851
        %1077 = vmatpush.msra.mxu0 %v850
        %1078 = vmatpush.msra.mxu0 %v849
        %1079 = vmatpush.msra.mxu0 %v848
        %1080 = vmatpush.msra.mxu0 %v847
        %1081 = vmatpush.msra.mxu0 %v846
        %1082 = vmatpush.msra.mxu0 %v845
        %1083 = vmatpush.msra.mxu0 %v844
        %1084 = vmatpush.msra.mxu0 %v843
        %1085 = vmatmul.f32.gmra.mxu0 %v877
        %v1086 = vpop.f32.mrf.mxu0
        %v1087 = vadd.f32 %v1022, %v1086
        %1088 = vmatmul.f32.gmra.mxu0 %v881
        %v1089 = vpop.f32.mrf.mxu0
        %v1090 = vadd.f32 %v1025, %v1089
        %1091 = vmatmul.f32.gmra.mxu0 %v885
        %v1092 = vpop.f32.mrf.mxu0
        %v1093 = vadd.f32 %v1028, %v1092
        %1094 = vmatmul.f32.gmra.mxu0 %v889
        %v1095 = vpop.f32.mrf.mxu0
        %v1096 = vadd.f32 %v1031, %v1095
        %1097 = vmatmul.f32.gmra.mxu0 %v893
        %v1098 = vpop.f32.mrf.mxu0
        %v1099 = vadd.f32 %v1034, %v1098
        %1100 = vmatmul.f32.gmra.mxu0 %v897
        %v1101 = vpop.f32.mrf.mxu0
        %v1102 = vadd.f32 %v1037, %v1101
        %1103 = vmatmul.f32.gmra.mxu0 %v901
        %v1104 = vpop.f32.mrf.mxu0
        %v1105 = vadd.f32 %v1040, %v1104
        %1106 = vmatmul.f32.gmra.mxu0 %v905
        %v1107 = vpop.f32.mrf.mxu0
        %v1108 = vadd.f32 %v1043, %v1107
        %1109 = vmatmul.f32.gmra.mxu0 %v909
        %v1110 = vpop.f32.mrf.mxu0
        %v1111 = vadd.f32 %v1046, %v1110
        %1112 = vmatmul.f32.gmra.mxu0 %v913
        %v1113 = vpop.f32.mrf.mxu0
        %v1114 = vadd.f32 %v1049, %v1113
        %1115 = vmatmul.f32.gmra.mxu0 %v917
        %v1116 = vpop.f32.mrf.mxu0
        %v1117 = vadd.f32 %v1052, %v1116
        %1118 = vmatmul.f32.gmra.mxu0 %v921
        %v1119 = vpop.f32.mrf.mxu0
        %v1120 = vadd.f32 %v1055, %v1119
        %1121 = vmatmul.f32.gmra.mxu0 %v925
        %v1122 = vpop.f32.mrf.mxu0
        %v1123 = vadd.f32 %v1058, %v1122
        %1124 = vmatmul.f32.gmra.mxu0 %v929
        %v1125 = vpop.f32.mrf.mxu0
        %v1126 = vadd.f32 %v1061, %v1125
        %1127 = vmatmul.f32.gmra.mxu0 %v933
        %v1128 = vpop.f32.mrf.mxu0
        %v1129 = vadd.f32 %v1064, %v1128
        %1130 = vmatmul.f32.gmra.mxu0 %v937
        %v1131 = vpop.f32.mrf.mxu0
        %v1132 = vadd.f32 %v1067, %v1131
        %1133 = vdwg.mxu0
        %1134 = vmatpush.msra.mxu0 %v874
        %1135 = vmatpush.msra.mxu0 %v873
        %1136 = vmatpush.msra.mxu0 %v872
        %1137 = vmatpush.msra.mxu0 %v871
        %1138 = vmatpush.msra.mxu0 %v870
        %1139 = vmatpush.msra.mxu0 %v869
        %1140 = vmatpush.msra.mxu0 %v868
        %1141 = vmatpush.msra.mxu0 %v867
        %1142 = vmatpush.msra.mxu0 %v866
        %1143 = vmatpush.msra.mxu0 %v865
        %1144 = vmatpush.msra.mxu0 %v864
        %1145 = vmatpush.msra.mxu0 %v863
        %1146 = vmatpush.msra.mxu0 %v862
        %1147 = vmatpush.msra.mxu0 %v861
        %1148 = vmatpush.msra.mxu0 %v860
        %1149 = vmatpush.msra.mxu0 %v859
        %1150 = vmatmul.f32.gmra.mxu0 %v878
        %v1151 = vpop.f32.mrf.mxu0
        %v1152 = vadd.f32 %v1087, %v1151
        %1153 = vmatmul.f32.gmra.mxu0 %v882
        %v1154 = vpop.f32.mrf.mxu0
        %v1155 = vadd.f32 %v1090, %v1154
        %1156 = vmatmul.f32.gmra.mxu0 %v886
        %v1157 = vpop.f32.mrf.mxu0
        %v1158 = vadd.f32 %v1093, %v1157
        %1159 = vmatmul.f32.gmra.mxu0 %v890
        %v1160 = vpop.f32.mrf.mxu0
        %v1161 = vadd.f32 %v1096, %v1160
        %1162 = vmatmul.f32.gmra.mxu0 %v894
        %v1163 = vpop.f32.mrf.mxu0
        %v1164 = vadd.f32 %v1099, %v1163
        %1165 = vmatmul.f32.gmra.mxu0 %v898
        %v1166 = vpop.f32.mrf.mxu0
        %v1167 = vadd.f32 %v1102, %v1166
        %1168 = vmatmul.f32.gmra.mxu0 %v902
        %v1169 = vpop.f32.mrf.mxu0
        %v1170 = vadd.f32 %v1105, %v1169
        %1171 = vmatmul.f32.gmra.mxu0 %v906
        %v1172 = vpop.f32.mrf.mxu0
        %v1173 = vadd.f32 %v1108, %v1172
        %1174 = vmatmul.f32.gmra.mxu0 %v910
        %v1175 = vpop.f32.mrf.mxu0
        %v1176 = vadd.f32 %v1111, %v1175
        %1177 = vmatmul.f32.gmra.mxu0 %v914
        %v1178 = vpop.f32.mrf.mxu0
        %v1179 = vadd.f32 %v1114, %v1178
        %1180 = vmatmul.f32.gmra.mxu0 %v918
        %v1181 = vpop.f32.mrf.mxu0
        %v1182 = vadd.f32 %v1117, %v1181
        %1183 = vmatmul.f32.gmra.mxu0 %v922
        %v1184 = vpop.f32.mrf.mxu0
        %v1185 = vadd.f32 %v1120, %v1184
        %1186 = vmatmul.f32.gmra.mxu0 %v926
        %v1187 = vpop.f32.mrf.mxu0
        %v1188 = vadd.f32 %v1123, %v1187
        %1189 = vmatmul.f32.gmra.mxu0 %v930
        %v1190 = vpop.f32.mrf.mxu0
        %v1191 = vadd.f32 %v1126, %v1190
        %1192 = vmatmul.f32.gmra.mxu0 %v934
        %v1193 = vpop.f32.mrf.mxu0
        %v1194 = vadd.f32 %v1129, %v1193
        %1195 = vmatmul.f32.gmra.mxu0 %v938
        %v1196 = vpop.f32.mrf.mxu0
        %v1197 = vadd.f32 %v1132, %v1196
        %1198 = vdwg.mxu0
        %1199 = vst [vmem:[%s303] sm:$0xff] %v1152
        %1200 = vst [vmem:[%s303 + $0x8] sm:$0xff] %v1155
        %1201 = vst [vmem:[%s303 + $0x10] sm:$0xff] %v1158
        %1202 = vst [vmem:[%s303 + $0x18] sm:$0xff] %v1161
        %1203 = vst [vmem:[%s303 + $0x20] sm:$0xff] %v1164
        %1204 = vst [vmem:[%s303 + $0x28] sm:$0xff] %v1167
        %1205 = vst [vmem:[%s303 + $0x30] sm:$0xff] %v1170
        %1206 = vst [vmem:[%s303 + $0x38] sm:$0xff] %v1173
        %1207 = vst [vmem:[%s303 + $0x40] sm:$0xff] %v1176
        %1208 = vst [vmem:[%s303 + $0x48] sm:$0xff] %v1179
        %1209 = vst [vmem:[%s303 + $0x50] sm:$0xff] %v1182
        %1210 = vst [vmem:[%s303 + $0x58] sm:$0xff] %v1185
        %1211 = vst [vmem:[%s303 + $0x60] sm:$0xff] %v1188
        %1212 = vst [vmem:[%s303 + $0x68] sm:$0xff] %v1191
        %1213 = vst [vmem:[%s303 + $0x70] sm:$0xff] %v1194
        %1214 = vst [vmem:[%s303 + $0x78] sm:$0xff] %v1197
        %v1215 = vld [vmem:[%s4] sm:$0xff]
        %v1216 = vld [vmem:[%s4 + $0x8] sm:$0xff]
        %v1217 = vld [vmem:[%s4 + $0x10] sm:$0xff]
        %v1218 = vld [vmem:[%s4 + $0x18] sm:$0xff]
        %1219 = vmatpush.msra.mxu0 %v826
        %1220 = vmatpush.msra.mxu0 %v825
        %1221 = vmatpush.msra.mxu0 %v824
        %1222 = vmatpush.msra.mxu0 %v823
        %1223 = vmatpush.msra.mxu0 %v822
        %1224 = vmatpush.msra.mxu0 %v821
        %1225 = vmatpush.msra.mxu0 %v820
        %1226 = vmatpush.msra.mxu0 %v819
        %1227 = vmatpush.msra.mxu0 %v818
        %1228 = vmatpush.msra.mxu0 %v817
        %1229 = vmatpush.msra.mxu0 %v816
        %1230 = vmatpush.msra.mxu0 %v815
        %1231 = vmatpush.msra.mxu0 %v814
        %1232 = vmatpush.msra.mxu0 %v813
        %1233 = vmatpush.msra.mxu0 %v812
        %1234 = vmatpush.msra.mxu0 %v811
        %1235 = vmatmul.f32.gmra.mxu0 %v1215
        %v1236 = vpop.f32.mrf.mxu0
        %v1237 = vadd.f32 0.0, %v1236
        %1238 = vdwg.mxu0
        %1239 = vmatpush.msra.mxu0 %v842
        %1240 = vmatpush.msra.mxu0 %v841
        %1241 = vmatpush.msra.mxu0 %v840
        %1242 = vmatpush.msra.mxu0 %v839
        %1243 = vmatpush.msra.mxu0 %v838
        %1244 = vmatpush.msra.mxu0 %v837
        %1245 = vmatpush.msra.mxu0 %v836
        %1246 = vmatpush.msra.mxu0 %v835
        %1247 = vmatpush.msra.mxu0 %v834
        %1248 = vmatpush.msra.mxu0 %v833
        %1249 = vmatpush.msra.mxu0 %v832
        %1250 = vmatpush.msra.mxu0 %v831
        %1251 = vmatpush.msra.mxu0 %v830
        %1252 = vmatpush.msra.mxu0 %v829
        %1253 = vmatpush.msra.mxu0 %v828
        %1254 = vmatpush.msra.mxu0 %v827
        %1255 = vmatmul.f32.gmra.mxu0 %v1216
        %v1256 = vpop.f32.mrf.mxu0
        %v1257 = vadd.f32 %v1237, %v1256
        %1258 = vdwg.mxu0
        %1259 = vmatpush.msra.mxu0 %v858
        %1260 = vmatpush.msra.mxu0 %v857
        %1261 = vmatpush.msra.mxu0 %v856
        %1262 = vmatpush.msra.mxu0 %v855
        %1263 = vmatpush.msra.mxu0 %v854
        %1264 = vmatpush.msra.mxu0 %v853
        %1265 = vmatpush.msra.mxu0 %v852
        %1266 = vmatpush.msra.mxu0 %v851
        %1267 = vmatpush.msra.mxu0 %v850
        %1268 = vmatpush.msra.mxu0 %v849
        %1269 = vmatpush.msra.mxu0 %v848
        %1270 = vmatpush.msra.mxu0 %v847
        %1271 = vmatpush.msra.mxu0 %v846
        %1272 = vmatpush.msra.mxu0 %v845
        %1273 = vmatpush.msra.mxu0 %v844
        %1274 = vmatpush.msra.mxu0 %v843
        %1275 = vmatmul.f32.gmra.mxu0 %v1217
        %v1276 = vpop.f32.mrf.mxu0
        %v1277 = vadd.f32 %v1257, %v1276
        %1278 = vdwg.mxu0
        %1279 = vmatpush.msra.mxu0 %v874
        %1280 = vmatpush.msra.mxu0 %v873
        %1281 = vmatpush.msra.mxu0 %v872
        %1282 = vmatpush.msra.mxu0 %v871
        %1283 = vmatpush.msra.mxu0 %v870
        %1284 = vmatpush.msra.mxu0 %v869
        %1285 = vmatpush.msra.mxu0 %v868
        %1286 = vmatpush.msra.mxu0 %v867
        %1287 = vmatpush.msra.mxu0 %v866
        %1288 = vmatpush.msra.mxu0 %v865
        %1289 = vmatpush.msra.mxu0 %v864
        %1290 = vmatpush.msra.mxu0 %v863
        %1291 = vmatpush.msra.mxu0 %v862
        %1292 = vmatpush.msra.mxu0 %v861
        %1293 = vmatpush.msra.mxu0 %v860
        %1294 = vmatpush.msra.mxu0 %v859
        %1295 = vmatmul.f32.gmra.mxu0 %v1218
        %v1296 = vpop.f32.mrf.mxu0
        %v1297 = vadd.f32 %v1277, %v1296
        %1298 = vdwg.mxu0
        %v1299 = vpack.c.bf16 %v1297, %v1297
        %v1300 = vld [vmem:[%s5] sm:$0xf]
        %v1301 = vld [vmem:[%s5 + $0x4] sm:$0xf]
        %v1302 = vld [vmem:[%s5 + $0x8] sm:$0xf]
        %v1303 = vld [vmem:[%s5 + $0xc] sm:$0xf]
        %v1304 = vld [vmem:[%s5 + $0x10] sm:$0xf]
        %v1305 = vld [vmem:[%s5 + $0x14] sm:$0xf]
        %v1306 = vld [vmem:[%s5 + $0x18] sm:$0xf]
        %v1307 = vld [vmem:[%s5 + $0x1c] sm:$0xf]
        %v1308 = vld [vmem:[%s5 + $0x20] sm:$0xf]
        %v1309 = vld [vmem:[%s5 + $0x24] sm:$0xf]
        %v1310 = vld [vmem:[%s5 + $0x28] sm:$0xf]
        %v1311 = vld [vmem:[%s5 + $0x2c] sm:$0xf]
        %v1312 = vld [vmem:[%s5 + $0x30] sm:$0xf]
        %v1313 = vld [vmem:[%s5 + $0x34] sm:$0xf]
        %v1314 = vld [vmem:[%s5 + $0x38] sm:$0xf]
        %v1315 = vld [vmem:[%s5 + $0x3c] sm:$0xf]
        %v1316 = vld [vmem:[%s6] sm:$0x1]
        %v1318 = vperm.slane %v1316, 0
        %v1336 = vunpack.c.l.b16 %v1300
        %v1337 = vunpack.c.l.b16 %v1301
        %v1338 = vunpack.c.l.b16 %v1302
        %v1339 = vunpack.c.l.b16 %v1303
        %v1340 = vunpack.c.l.b16 %v1304
        %v1341 = vunpack.c.l.b16 %v1305
        %v1342 = vunpack.c.l.b16 %v1306
        %v1343 = vunpack.c.l.b16 %v1307
        %v1344 = vunpack.c.l.b16 %v1308
        %v1345 = vunpack.c.l.b16 %v1309
        %v1346 = vunpack.c.l.b16 %v1310
        %v1347 = vunpack.c.l.b16 %v1311
        %v1348 = vunpack.c.l.b16 %v1312
        %v1349 = vunpack.c.l.b16 %v1313
        %v1350 = vunpack.c.l.b16 %v1314
        %v1351 = vunpack.c.l.b16 %v1315
        %v1352 = vpack.c.b16 %v1337, %v1336
        %v1353 = vpack.c.b16 %v1339, %v1338
        %v1354 = vpack.c.b16 %v1341, %v1340
        %v1355 = vpack.c.b16 %v1343, %v1342
        %v1356 = vpack.c.b16 %v1345, %v1344
        %v1357 = vpack.c.b16 %v1347, %v1346
        %v1358 = vpack.c.b16 %v1349, %v1348
        %v1359 = vpack.c.b16 %v1351, %v1350
        %1368 = vmatpush.bf16.msra.mxu0 %v1359
        %1369 = vmatpush.bf16.msra.mxu0 %v1358
        %1370 = vmatpush.bf16.msra.mxu0 %v1357
        %1371 = vmatpush.bf16.msra.mxu0 %v1356
        %1372 = vmatpush.bf16.msra.mxu0 %v1355
        %1373 = vmatpush.bf16.msra.mxu0 %v1354
        %1374 = vmatpush.bf16.msra.mxu0 %v1353
        %1375 = vmatpush.bf16.msra.mxu0 %v1352
        %1376 = vmatmul.bf16.gmra.mxu0 %v1299
        %v1377 = vpop.f32.mrf.mxu0
        %v1378 = vadd.f32 %v1318, %v1377
        %v1379 = vpop.f32.mrf.mxu0
        %1380 = vdwg.mxu0
        %v1381 = vxor.u32 %v1378, 2147483648
        %v1382 = vmul.f32 %v1381, 1.442695
        %v1383 = vpow.pop %v1382
        %v1384 = vadd.f32 %v1383, 1.0
        %v1385 = vrcp.pop %v1384
        %v1386 = vmul.f32 %v1384, %v1385
        %v1387 = vsub.f32 1.0, %v1386
        %v1388 = vmul.f32 %v1385, %v1387
        %v1389 = vadd.f32 %v1385, %v1388
        %vm1390 = vweird.f32 %v1384
        %vm1391 = vweird.f32 %v1385
        %vm1392 = vmor %vm1390, %vm1391
        %v1393 = vsel %vm1392, %v1385, %v1389
        %v1394 = vand.u32 2147483647, %v1384
        %vm1395 = vcmp.eq.f32.partialorder %v1394, 8.507059e+37
        %v1396 = vand.u32 %v1384, 2147483648
        %v1397 = vor.u32 1.1754944e-38, %v1396
        %v1398 = vsel %vm1395, %v1397, %v1393
        %v1399 = vmul.f32 1.0, %v1398
        %1400 = vst [vmem:[%s310] sm:$0xff] %v1399
        %s1401 = sand.u32 %s186, 1
        %s1402 = scalar_lea.sflag [#allocation3], %s1401
        %s1403 = sand.u32 %s186, 1
        %s1404 = smul.addr %s1403, 128
        %s1405 = scalar_lea.vmem [#allocation2], %s1404
        %s1406 = sand.u32 %s212, 1
        %s1407 = scalar_lea.sflag [#allocation5], %s1406
        %s1408 = sand.u32 %s212, 1
        %s1409 = smul.addr %s1408, 8
        %s1410 = scalar_lea.vmem [#allocation4], %s1409
        // Predicated region
        $region49: #{future_and_attr_encoder.1} parent=47 // pred_check
          %p1411 = pneg %p196
        $region50: #{future_and_attr_encoder.1} parent=47 // pred_check_branch
          %1413 = sbr.rel (%p1411) target = $region52
        $region51: #{future_and_attr_encoder.1} parent=47 // pred_region
          %s1414 = smul.u32 8, %s26
          %1416 = vsyncadd %s1402, 0
          %s1417 = smul.addr %s1414, 2
          %s1418 = smul.addr %s1417, 8
          %s1419 = scalar_lea.hbm %s7, %s1418
          %s1420 = sshll.u32 %s1405, 4
          %s1421 = int_to_ptr.vmem [resolvable:$true] %s1420
          %s1422 = sshll.u32 %s1419, 4
          %s1423 = int_to_ptr.hbm [resolvable:$true] %s1422
          %1428 = dma.vmem_to_hbm [thread:$0]  %s1421, 2048, %s1423, %s1402, 128, 128, 8
        $region52: #{future_and_attr_encoder.1} parent=47 // pred_fallthru
          _
        // Predicated region
        $region53: #{future_and_attr_encoder.1} parent=47 // pred_check
          %p1429 = pneg %p222
        $region54: #{future_and_attr_encoder.1} parent=47 // pred_check_branch
          %1431 = sbr.rel (%p1429) target = $region56
        $region55: #{future_and_attr_encoder.1} parent=47 // pred_region
          %1433 = vsyncadd %s1407, 0
          %s1434 = smul.addr %s26, 8
          %s1435 = scalar_lea.hbm %s8, %s1434
          %s1437 = sshll.u32 %s1410, 4
          %s1438 = int_to_ptr.vmem [resolvable:$true] %s1437
          %s1439 = sshll.u32 %s1435, 4
          %s1440 = int_to_ptr.hbm [resolvable:$true] %s1439
          %1442 = dma.vmem_to_hbm [thread:$0]  %s1438, 128, %s1440, %s1407
        $region56: #{future_and_attr_encoder.1} parent=47 // pred_fallthru
          _
      $region48: #{future_and_attr_encoder.1} parent=5 // pred_fallthru
        _
      %p1443 = scmp.le.s32.totalorder 2, %s21
      // Predicated region
      $region57: #{future_and_attr_encoder.1} parent=5 // pred_check
        %p1444 = pneg %p1443
      $region58: #{future_and_attr_encoder.1} parent=5 // pred_check_branch
        %1446 = sbr.rel (%p1444) target = $region60
      $region59: #{future_and_attr_encoder.1} parent=5 // pred_region
        %s1447 = ssub.s32 %s21, 2
        // Predicated region
        $region61: #{future_and_attr_encoder.1} parent=59 // pred_check
          %p1448 = pneg %p202
        $region62: #{future_and_attr_encoder.1} parent=59 // pred_check_branch
          %1450 = sbr.rel (%p1448) target = $region64
        $region63: #{future_and_attr_encoder.1} parent=59 // pred_region
          %s1451 = sand.u32 %s187, 1
          %s1452 = scalar_lea.sflag [#allocation3], %s1451
          %s1453 = sand.u32 %s187, 1
          %s1454 = smul.addr %s1453, 128
          %s1455 = scalar_lea.vmem [#allocation2], %s1454
          %1457 = dma.done %s1452, 2048
        $region64: #{future_and_attr_encoder.1} parent=59 // pred_fallthru
          _
        // Predicated region
        $region65: #{future_and_attr_encoder.1} parent=59 // pred_check
          %p1458 = pneg %p228
        $region66: #{future_and_attr_encoder.1} parent=59 // pred_check_branch
          %1460 = sbr.rel (%p1458) target = $region68
        $region67: #{future_and_attr_encoder.1} parent=59 // pred_region
          %s1461 = sand.u32 %s213, 1
          %s1462 = scalar_lea.sflag [#allocation5], %s1461
          %s1463 = sand.u32 %s213, 1
          %s1464 = smul.addr %s1463, 8
          %s1465 = scalar_lea.vmem [#allocation4], %s1464
          %1467 = dma.done %s1462, 128
        $region68: #{future_and_attr_encoder.1} parent=59 // pred_fallthru
          _
      $region60: #{future_and_attr_encoder.1} parent=5 // pred_fallthru
        _
    $region6: #{future_and_attr_encoder.1} parent=1 // loop_footer
      %s25 = sadd.s32 1, %s21
    $region7: #{future_and_attr_encoder.1} parent=1 // loop_footer_branch
      %20 = sbr.rel target = $region3
    $region8: #{future_and_attr_encoder.1} parent=1 // loop_exit
      _
    %1468 = vsyncpa [#allocation3], 1
    %s1469 = scalar_lea.sflag [#allocation3], 1
    %1470 = vsyncpa %s1469, 1
    %1471 = vsyncpa [#allocation5], 1
    %s1472 = scalar_lea.sflag [#allocation5], 1
    %1473 = vsyncpa %s1472, 1

</llo_original>
